<compile_context>
chip_gen: v7x
topology: tpu7x:2x2x1
jax: 0.10.0
libtpu: 0.0.40
codegen_flags: <defaults>
</compile_context>

<pallas_src>
import functools
import math
import re

import jax
import jax.numpy as jnp
from jax.experimental import pallas as pl
from jax.experimental.pallas import tpu as pltpu

_LANE = 128
_INV_SQRT2 = 1.0 / math.sqrt(2.0)


def _round_up(x, m):
    return (x + m - 1) // m * m


# ---------------------------------------------------------------------------
# Kernels
# ---------------------------------------------------------------------------

def convffn_resident_kernel(x_ref, w1_ref, b1_ref, w2_ref, b2_ref, o_ref, *,
                            ew_dtype):
    """Weights fully VMEM-resident; 1-D 'parallel' grid over row tiles.

    x_ref : (TM, C_p)  bf16   channels-last activation rows
    w1_ref: (C_p, K_p) bf16   folded pw1 weight (preffn_bn & pw1-bn absorbed)
    b1_ref: (1, K_p)   f32
    w2_ref: (K_p, C_p) bf16   folded pw2 weight (pw2-bn scale absorbed)
    b2_ref: (1, C_p)   f32
    o_ref : (TM, C_p)  f32    x + FFN(x)
    """
    x = x_ref[...]                                               # bf16
    h = jnp.dot(x, w1_ref[...], preferred_element_type=jnp.float32)
    h = h + b1_ref[...]                                          # f32 bias add
    # tanh-approx GELU rides the EUP slot; bf16 elementwise on v6e/v7x.
    # TODO(synk): nn.GELU() defaults to the exact erf form; the tanh
    # approximation deviates by <3e-3 absolute (flagged per perf review).
    g = jax.nn.gelu(h.astype(ew_dtype), approximate=True)
    y = jnp.dot(g.astype(jnp.bfloat16), w2_ref[...],
                preferred_element_type=jnp.float32)
    o_ref[...] = (x.astype(jnp.float32) + y + b2_ref[...]).astype(o_ref.dtype)


def convffn_ktiled_kernel(x_ref, w1_ref, b1_ref, w2_ref, b2_ref, o_ref,
                          acc_ref, *, ew_dtype):
    """Fallback for very wide FFNs: internal channels tiled as a reduction
    grid axis ('arbitrary', last) with an f32 VMEM accumulator."""
    k = pl.program_id(1)

    @pl.when(k == 0)
    def _init():
        # Fold the pw2 bias into the accumulator init (no finalize VPU add).
        acc_ref[...] = jnp.broadcast_to(b2_ref[...], acc_ref.shape)

    x = x_ref[...]                                               # bf16
    h = jnp.dot(x, w1_ref[...], preferred_element_type=jnp.float32)
    h = h + b1_ref[...]
    g = jax.nn.gelu(h.astype(ew_dtype), approximate=True)
    acc_ref[...] += jnp.dot(g.astype(jnp.bfloat16), w2_ref[...],
                            preferred_element_type=jnp.float32)

    @pl.when(k == pl.num_programs(1) - 1)
    def _finalize():
        o_ref[...] = (x.astype(jnp.float32) + acc_ref[...]).astype(o_ref.dtype)


# ---------------------------------------------------------------------------
# Hardware query & tiling policy
# ---------------------------------------------------------------------------

def _tpu_generation():
    try:
        kind = jax.devices()[0].device_kind
    except Exception:
        return 0
    m = re.search(r"v(\d+)", kind.lower())
    return int(m.group(1)) if m else 0


def _vmem_capacity_bytes(gen):
    by_gen = (64 << 20) if gen >= 7 else ((128 << 20) if gen in (5, 6)
                                          else (64 << 20))
    try:
        cap = int(pltpu.get_tpu_info().vmem_capacity_bytes)
        if cap > 0:
            return min(cap, by_gen) if gen else cap
    except Exception:
        pass
    return by_gen


def _choose_tiling(R, C_p, K_p, vmem_limit, tile_rows):
    """Returns (tm, resident, tk). Budget assumes double-buffered weights so
    the non-Buffered fallback path always fits as well."""
    budget = int(vmem_limit * 0.85)

    def rnd8(v):
        return max(8, _round_up(v, 8))

    tm = rnd8(min(tile_rows, _round_up(R, 8)))
    # >= 2 row tiles so v7x's two TensorCores both get work ('parallel' axis).
    if R > 8 and _round_up(R, tm) // tm < 2:
        tm = rnd8(-(-R // 2))

    def est(tm_, tk_, resident_):
        b = (2 * tm_ * C_p * 2          # x tiles, bf16, double-buffered
             + 2 * tm_ * C_p * 4        # out tiles, f32, double-buffered
             + tm_ * tk_ * 8            # f32 matmul1 result + gelu/bf16 copies
             + 2 * 2 * C_p * tk_ * 2    # W1 + W2 tiles, bf16, double-buffered
             + 4 * (tk_ + C_p) * 4)     # biases
        if not resident_:
            b += tm_ * C_p * 4          # f32 accumulator scratch
        return b + (2 << 20)            # Mosaic-internal slack

    # Preferred: weights fully resident (streamed from HBM exactly once).
    t = tm
    while est(t, K_p, True) > budget and t > 256:
        t = rnd8(max(256, t // 2))
    if est(t, K_p, True) <= budget:
        return t, True, K_p

    # Fallback: K-reduction grid. Never drop below tk=256 (pad K instead).
    cands = [c for c in (2048, 1024, 512, 256) if c <= max(256, K_p)]
    for tk in cands:
        for t in (tm, rnd8(max(256, tm // 2)), 256):
            if est(t, tk, False) <= budget:
                return t, False, tk
    return 256, False, 256


# ---------------------------------------------------------------------------
# BN folding + forward wrapper
# ---------------------------------------------------------------------------

def fold_convffn_params(raw, eps=1e-5):
    """Fold the three inference-mode BatchNorms into the 1x1-conv weights.

    raw["w1"]: (C_int, C_in)   pw1 conv weight (1x1 kernel squeezed)
    raw["w2"]: (C_out, C_int)  pw2 conv weight
    raw["bn0"/"bn1"/"bn2"]: dicts with gamma/beta/mean/var
    """
    def scale_bias(bn):
        s = bn["gamma"] / jnp.sqrt(bn["var"] + eps)
        return s, bn["beta"] - bn["mean"] * s

    s0, b0 = scale_bias(raw["bn0"])
    s1, b1 = scale_bias(raw["bn1"])
    s2, b2 = scale_bias(raw["bn2"])

    w1 = raw["w1"].T.astype(jnp.float32)          # (C_in, C_int)
    w2 = raw["w2"].T.astype(jnp.float32)          # (C_int, C_out)

    w1f = (s0[:, None] * w1) * s1[None, :]        # absorbs bn0 + bn1 scales
    b1f = jnp.dot(b0, w1) * s1 + b1               # absorbs bn0 + bn1 biases
    w2f = w2 * s2[None, :]                        # absorbs bn2 scale
    b2f = b2                                      # bn2 bias

    return {"w1": w1f.astype(jnp.bfloat16), "b1": b1f.astype(jnp.float32),
            "w2": w2f.astype(jnp.bfloat16), "b2": b2f.astype(jnp.float32)}


def convffn_forward(x_nchw, folded, *, tile_rows=None):
    """x_nchw: (N, C_in, H, W) float32. Returns (N, C_in, H, W) float32."""
    N, C_in, H, W = x_nchw.shape
    C_int = folded["w1"].shape[1]
    C_out = folded["w2"].shape[1]
    assert C_out == C_in, "residual requires out_channels == in_channels"

    gen = _tpu_generation()
    vmem_cap = _vmem_capacity_bytes(gen)
    # Per-generation scoped VMEM limit: ~112 MiB on v5e/v6e, ~48 MiB on v7x.
    vmem_limit = int(max(32 << 20, min(vmem_cap - (16 << 20), 112 << 20)))
    # bf16 VPU/EUP exists on v6e/v7x; keep elementwise math f32 elsewhere.
    ew_dtype = jnp.bfloat16 if gen >= 6 else jnp.float32

    if tile_rows is None:
        tile_rows = 1024 if vmem_cap >= (96 << 20) else 512

    # NCHW -> (N*H*W, C) channels-last rows, streamed in bf16.
    # TODO(synk): keep the surrounding model channels-last end-to-end so these
    # two full-tensor transposes (extra HBM round trips) are not paid per block.
    x_rows = jnp.transpose(x_nchw, (0, 2, 3, 1)).reshape(N * H * W, C_in)
    x_rows = x_rows.astype(jnp.bfloat16)
    R = x_rows.shape[0]

    C_p = _round_up(C_in, _LANE)
    K_p = _round_up(C_int, _LANE)

    tm, resident, tk = _choose_tiling(R, C_p, K_p, vmem_limit, tile_rows)
    K_pad = K_p if resident else _round_up(C_int, tk)

    # Lane-dense zero padding (padded channels stay exactly zero throughout).
    w1, b1, w2, b2 = folded["w1"], folded["b1"], folded["w2"], folded["b2"]
    if (C_p, K_pad) != (C_in, C_int):
        w1 = jnp.pad(w1, ((0, C_p - C_in), (0, K_pad - C_int)))
        b1 = jnp.pad(b1, (0, K_pad - C_int))
        w2 = jnp.pad(w2, ((0, K_pad - C_int), (0, C_p - C_in)))
        b2 = jnp.pad(b2, (0, C_p - C_in))
    b1 = b1.reshape(1, K_pad)
    b2 = b2.reshape(1, C_p)

    Rp = _round_up(R, tm)
    if Rp != R or C_p != C_in:
        x_rows = jnp.pad(x_rows, ((0, Rp - R), (0, C_p - C_in)))

    out_shape = jax.ShapeDtypeStruct((Rp, C_p), jnp.float32)

    def run(single_buffer_weights):
        def wspec(shape):
            # Grid-invariant operands need no second pipeline buffer.
            if single_buffer_weights:
                try:
                    return pl.BlockSpec(shape, lambda i: (0, 0),
                                        pipeline_mode=pl.Buffered(1))
                except Exception:
                    pass
            return pl.BlockSpec(shape, lambda i: (0, 0))

        if resident:
            grid = (Rp // tm,)
            in_specs = [
                pl.BlockSpec((tm, C_p), lambda i: (i, 0)),   # x rows (bf16)
                wspec((C_p, K_pad)),                         # W1f
                wspec((1, K_pad)),                           # b1f
                wspec((K_pad, C_p)),                         # W2f
                wspec((1, C_p)),                             # b2f
            ]
            out_specs = pl.BlockSpec((tm, C_p), lambda i: (i, 0))
            scratch = []
            kern = functools.partial(convffn_resident_kernel, ew_dtype=ew_dtype)
            dim_sem = ("parallel",)
        else:
            grid = (Rp // tm, K_pad // tk)
            in_specs = [
                pl.BlockSpec((tm, C_p), lambda i, k: (i, 0)),
                pl.BlockSpec((C_p, tk), lambda i, k: (0, k)),
                pl.BlockSpec((1, tk), lambda i, k: (0, k)),
                pl.BlockSpec((tk, C_p), lambda i, k: (k, 0)),
                pl.BlockSpec((1, C_p), lambda i, k: (0, 0)),
            ]
            out_specs = pl.BlockSpec((tm, C_p), lambda i, k: (i, 0))
            scratch = [pltpu.VMEM((tm, C_p), jnp.float32)]
            kern = functools.partial(convffn_ktiled_kernel, ew_dtype=ew_dtype)
            dim_sem = ("parallel", "arbitrary")

        return pl.pallas_call(
            kern,
            out_shape=out_shape,
            grid_spec=pltpu.PrefetchScalarGridSpec(
                num_scalar_prefetch=0,
                grid=grid,
                in_specs=in_specs,
                out_specs=out_specs,
                scratch_shapes=scratch),
            compiler_params=pltpu.CompilerParams(
                dimension_semantics=dim_sem,
                vmem_limit_bytes=vmem_limit),
        )(x_rows, w1, b1, w2, b2)

    if resident:
        try:
            out_rows = run(True)
        except Exception:
            # pl.Buffered(1) unsupported on this Mosaic build; the plain
            # (double-buffered) spec still fits the budget by construction.
            out_rows = run(False)
    else:
        out_rows = run(False)

    out_rows = out_rows[:R, :C_in]
    return jnp.transpose(out_rows.reshape(N, H, W, C_in), (0, 3, 1, 2))


# ---------------------------------------------------------------------------
# Reference & test
# ---------------------------------------------------------------------------

def make_raw_params(key, in_channels, internal_channels, out_channels):
    ks = jax.random.split(key, 5)
    f32 = jnp.float32

    def bn_params(k, c):
        k1, k2, k3, k4 = jax.random.split(k, 4)
        return {
            "gamma": 1.0 + 0.1 * jax.random.normal(k1, (c,), f32),
            "beta": 0.1 * jax.random.normal(k2, (c,), f32),
            "mean": 0.1 * jax.random.normal(k3, (c,), f32),
            "var": jnp.abs(1.0 + 0.1 * jax.random.normal(k4, (c,), f32)),
        }

    return {
        "bn0": bn_params(ks[0], in_channels),
        "w1": 0.1 * jax.random.normal(ks[1], (internal_channels, in_channels), f32),
        "bn1": bn_params(ks[2], internal_channels),
        "w2": 0.1 * jax.random.normal(ks[3], (out_channels, internal_channels), f32),
        "bn2": bn_params(ks[4], out_channels),
    }


def convffn_reference(x_nchw, raw, eps=1e-5):
    """Pure-JAX f32 reference mirroring the PyTorch module (unfolded BNs,
    exact-erf GELU)."""
    x = jnp.transpose(x_nchw, (0, 2, 3, 1)).astype(jnp.float32)

    def bn(h, p):
        s = p["gamma"] / jnp.sqrt(p["var"] + eps)
        return (h - p["mean"]) * s + p["beta"]

    h = bn(x, raw["bn0"])
    h = jnp.einsum("nhwc,dc->nhwd", h, raw["w1"])
    h = bn(h, raw["bn1"])
    h = 0.5 * h * (1.0 + jax.lax.erf(h * _INV_SQRT2))
    h = jnp.einsum("nhwc,dc->nhwd", h, raw["w2"])
    h = bn(h, raw["bn2"])
    y = x + h
    return jnp.transpose(y, (0, 3, 1, 2))


if __name__ == "__main__":
    # small shapes: batch=2, in_channels=4, internal=32, H=W=16
    N, C_in, C_int, H, W = 2, 4, 32, 16, 16
    key = jax.random.PRNGKey(0)
    kx, kp = jax.random.split(key)
    x = jax.random.normal(kx, (N, C_in, H, W), jnp.float32)

    raw = make_raw_params(kp, C_in, C_int, C_in)
    folded = fold_convffn_params(raw)

    out = convffn_forward(x, folded)
    out = jax.block_until_ready(out)

    ref = convffn_reference(x, raw)
    assert out.shape == x.shape
    max_err = float(jnp.max(jnp.abs(out - ref)))
    # bf16 activations/weights + tanh-approx GELU -> relaxed tolerance.
    assert jnp.allclose(out, ref, atol=2e-2, rtol=2e-2), max_err
    print("KERNEL_OK")
</pallas_src>

<mosaic_0001>
module attributes {stable_mosaic.version = 11 : i64} {
  func.func @convffn_resident_kernel(%arg0: i32, %arg1: memref<256x128xbf16, #tpu.memory_space<vmem>>, %arg2: memref<128x128xbf16, #tpu.memory_space<vmem>>, %arg3: memref<1x128xf32, #tpu.memory_space<vmem>>, %arg4: memref<128x128xbf16, #tpu.memory_space<vmem>>, %arg5: memref<1x128xf32, #tpu.memory_space<vmem>>, %arg6: memref<256x128xf32, #tpu.memory_space<vmem>>) attributes {dimension_semantics = [#tpu.dimension_semantics<parallel>], iteration_bounds = array<i64: 2>, scalar_prefetch = 0 : i64, scratch_operands = 0 : i64, tpu.core_type = #tpu.core_type<tc>, window_params = [{transform_indices = @transform_0, window_bounds = array<i64: 256, 128>}, {pipeline_mode = #tpu.pipeline_mode<synchronous>, transform_indices = @transform_1, window_bounds = array<i64: 128, 128>}, {pipeline_mode = #tpu.pipeline_mode<synchronous>, transform_indices = @transform_2, window_bounds = array<i64: 1, 128>}, {pipeline_mode = #tpu.pipeline_mode<synchronous>, transform_indices = @transform_3, window_bounds = array<i64: 128, 128>}, {pipeline_mode = #tpu.pipeline_mode<synchronous>, transform_indices = @transform_4, window_bounds = array<i64: 1, 128>}, {transform_indices = @transform_5, window_bounds = array<i64: 256, 128>}]} {
    %c0 = arith.constant 0 : index
    %c0_0 = arith.constant 0 : index
    %0 = vector.load %arg1[%c0, %c0_0] : memref<256x128xbf16, #tpu.memory_space<vmem>>, vector<256x128xbf16>
    %c0_1 = arith.constant 0 : index
    %c0_2 = arith.constant 0 : index
    %1 = vector.load %arg2[%c0_1, %c0_2] : memref<128x128xbf16, #tpu.memory_space<vmem>>, vector<128x128xbf16>
    %cst = arith.constant dense<0.000000e+00> : vector<256x128xf32>
    %2 = tpu.matmul %0, %1, %cst {dimension_numbers = #tpu.dot_dimension_numbers<[1], [0], [0], [1], [0, 0, 1, 1], [], []>} : vector<256x128xbf16>, vector<128x128xbf16>, vector<256x128xf32> -> vector<256x128xf32>
    %c0_3 = arith.constant 0 : index
    %c0_4 = arith.constant 0 : index
    %3 = vector.load %arg3[%c0_3, %c0_4] : memref<1x128xf32, #tpu.memory_space<vmem>>, vector<1x128xf32>
    %4 = vector.broadcast %3 : vector<1x128xf32> to vector<256x128xf32>
    %5 = arith.addf %2, %4 : vector<256x128xf32>
    %6 = arith.mulf %5, %5 : vector<256x128xf32>
    %7 = arith.mulf %5, %6 : vector<256x128xf32>
    %cst_5 = arith.constant 4.471500e-02 : f32
    %8 = vector.broadcast %cst_5 : f32 to vector<256x128xf32>
    %9 = arith.mulf %8, %7 : vector<256x128xf32>
    %10 = arith.addf %5, %9 : vector<256x128xf32>
    %cst_6 = arith.constant 0.797884583 : f32
    %11 = vector.broadcast %cst_6 : f32 to vector<256x128xf32>
    %12 = arith.mulf %11, %10 : vector<256x128xf32>
    %13 = math.tanh %12 : vector<256x128xf32>
    %cst_7 = arith.constant 1.000000e+00 : f32
    %14 = vector.broadcast %cst_7 : f32 to vector<256x128xf32>
    %15 = arith.addf %14, %13 : vector<256x128xf32>
    %cst_8 = arith.constant 5.000000e-01 : f32
    %16 = vector.broadcast %cst_8 : f32 to vector<256x128xf32>
    %17 = arith.mulf %16, %15 : vector<256x128xf32>
    %18 = arith.mulf %5, %17 : vector<256x128xf32>
    %19 = arith.truncf %18 : vector<256x128xf32> to vector<256x128xbf16>
    %c0_9 = arith.constant 0 : index
    %c0_10 = arith.constant 0 : index
    %20 = vector.load %arg4[%c0_9, %c0_10] : memref<128x128xbf16, #tpu.memory_space<vmem>>, vector<128x128xbf16>
    %cst_11 = arith.constant dense<0.000000e+00> : vector<256x128xf32>
    %21 = tpu.matmul %19, %20, %cst_11 {dimension_numbers = #tpu.dot_dimension_numbers<[1], [0], [0], [1], [0, 0, 1, 1], [], []>} : vector<256x128xbf16>, vector<128x128xbf16>, vector<256x128xf32> -> vector<256x128xf32>
    %22 = arith.extf %0 : vector<256x128xbf16> to vector<256x128xf32>
    %23 = arith.addf %22, %21 : vector<256x128xf32>
    %c0_12 = arith.constant 0 : index
    %c0_13 = arith.constant 0 : index
    %24 = vector.load %arg5[%c0_12, %c0_13] : memref<1x128xf32, #tpu.memory_space<vmem>>, vector<1x128xf32>
    %25 = vector.broadcast %24 : vector<1x128xf32> to vector<256x128xf32>
    %26 = arith.addf %23, %25 : vector<256x128xf32>
    %c0_14 = arith.constant 0 : index
    %c0_15 = arith.constant 0 : index
    %27 = vector.load %arg6[%c0_14, %c0_15] : memref<256x128xf32, #tpu.memory_space<vmem>>, vector<256x128xf32>
    tpu.vector_store %arg6[%c0_14, %c0_15], %26 {strides = array<i32>} : memref<256x128xf32, #tpu.memory_space<vmem>>, vector<256x128xf32>,
    return
  }
  func.func @transform_0(%arg0: i32) -> (i32, i32) {
    %c0_i32 = arith.constant 0 : i32
    %c0_i32_0 = arith.constant 0 : i32
    return %arg0, %c0_i32 : i32, i32
  }
  func.func @transform_1(%arg0: i32) -> (i32, i32) {
    %c0_i32 = arith.constant 0 : i32
    %c0_i32_0 = arith.constant 0 : i32
    %c0_i32_1 = arith.constant 0 : i32
    return %c0_i32, %c0_i32_0 : i32, i32
  }
  func.func @transform_2(%arg0: i32) -> (i32, i32) {
    %c0_i32 = arith.constant 0 : i32
    %c0_i32_0 = arith.constant 0 : i32
    %c0_i32_1 = arith.constant 0 : i32
    return %c0_i32, %c0_i32_0 : i32, i32
  }
  func.func @transform_3(%arg0: i32) -> (i32, i32) {
    %c0_i32 = arith.constant 0 : i32
    %c0_i32_0 = arith.constant 0 : i32
    %c0_i32_1 = arith.constant 0 : i32
    return %c0_i32, %c0_i32_0 : i32, i32
  }
  func.func @transform_4(%arg0: i32) -> (i32, i32) {
    %c0_i32 = arith.constant 0 : i32
    %c0_i32_0 = arith.constant 0 : i32
    %c0_i32_1 = arith.constant 0 : i32
    return %c0_i32, %c0_i32_0 : i32, i32
  }
  func.func @transform_5(%arg0: i32) -> (i32, i32) {
    %c0_i32 = arith.constant 0 : i32
    %c0_i32_0 = arith.constant 0 : i32
    return %arg0, %c0_i32 : i32, i32
  }
}

module attributes {stable_mosaic.version = 11 : i64} {
  func.func @convffn_resident_kernel(%arg0: i32, %arg1: memref<256x128xbf16, #tpu.memory_space<vmem>>, %arg2: memref<128x128xbf16, #tpu.memory_space<vmem>>, %arg3: memref<1x128xf32, #tpu.memory_space<vmem>>, %arg4: memref<128x128xbf16, #tpu.memory_space<vmem>>, %arg5: memref<1x128xf32, #tpu.memory_space<vmem>>, %arg6: memref<256x128xf32, #tpu.memory_space<vmem>>) attributes {dimension_semantics = [#tpu.dimension_semantics<parallel>], iteration_bounds = array<i64: 2>, scalar_prefetch = 0 : i64, scratch_operands = 0 : i64, tpu.core_type = #tpu.core_type<tc>, window_params = [{transform_indices = @transform_0, window_bounds = array<i64: 256, 128>}, {pipeline_mode = #tpu.pipeline_mode<synchronous>, transform_indices = @transform_1, window_bounds = array<i64: 128, 128>}, {pipeline_mode = #tpu.pipeline_mode<synchronous>, transform_indices = @transform_2, window_bounds = array<i64: 1, 128>}, {pipeline_mode = #tpu.pipeline_mode<synchronous>, transform_indices = @transform_3, window_bounds = array<i64: 128, 128>}, {pipeline_mode = #tpu.pipeline_mode<synchronous>, transform_indices = @transform_4, window_bounds = array<i64: 1, 128>}, {transform_indices = @transform_5, window_bounds = array<i64: 256, 128>}]} {
    %c0 = arith.constant 0 : index
    %c0_0 = arith.constant 0 : index
    %0 = vector.load %arg1[%c0, %c0_0] : memref<256x128xbf16, #tpu.memory_space<vmem>>, vector<256x128xbf16>
    %c0_1 = arith.constant 0 : index
    %c0_2 = arith.constant 0 : index
    %1 = vector.load %arg2[%c0_1, %c0_2] : memref<128x128xbf16, #tpu.memory_space<vmem>>, vector<128x128xbf16>
    %cst = arith.constant dense<0.000000e+00> : vector<256x128xf32>
    %2 = tpu.matmul %0, %1, %cst {dimension_numbers = #tpu.dot_dimension_numbers<[1], [0], [0], [1], [0, 0, 1, 1], [], []>} : vector<256x128xbf16>, vector<128x128xbf16>, vector<256x128xf32> -> vector<256x128xf32>
    %c0_3 = arith.constant 0 : index
    %c0_4 = arith.constant 0 : index
    %3 = vector.load %arg3[%c0_3, %c0_4] : memref<1x128xf32, #tpu.memory_space<vmem>>, vector<1x128xf32>
    %4 = vector.broadcast %3 : vector<1x128xf32> to vector<256x128xf32>
    %5 = arith.addf %2, %4 : vector<256x128xf32>
    %6 = arith.mulf %5, %5 : vector<256x128xf32>
    %7 = arith.mulf %5, %6 : vector<256x128xf32>
    %cst_5 = arith.constant 4.471500e-02 : f32
    %8 = vector.broadcast %cst_5 : f32 to vector<256x128xf32>
    %9 = arith.mulf %8, %7 : vector<256x128xf32>
    %10 = arith.addf %5, %9 : vector<256x128xf32>
    %cst_6 = arith.constant 0.797884583 : f32
    %11 = vector.broadcast %cst_6 : f32 to vector<256x128xf32>
    %12 = arith.mulf %11, %10 : vector<256x128xf32>
    %13 = math.tanh %12 : vector<256x128xf32>
    %cst_7 = arith.constant 1.000000e+00 : f32
    %14 = vector.broadcast %cst_7 : f32 to vector<256x128xf32>
    %15 = arith.addf %14, %13 : vector<256x128xf32>
    %cst_8 = arith.constant 5.000000e-01 : f32
    %16 = vector.broadcast %cst_8 : f32 to vector<256x128xf32>
    %17 = arith.mulf %16, %15 : vector<256x128xf32>
    %18 = arith.mulf %5, %17 : vector<256x128xf32>
    %19 = arith.truncf %18 : vector<256x128xf32> to vector<256x128xbf16>
    %c0_9 = arith.constant 0 : index
    %c0_10 = arith.constant 0 : index
    %20 = vector.load %arg4[%c0_9, %c0_10] : memref<128x128xbf16, #tpu.memory_space<vmem>>, vector<128x128xbf16>
    %cst_11 = arith.constant dense<0.000000e+00> : vector<256x128xf32>
    %21 = tpu.matmul %19, %20, %cst_11 {dimension_numbers = #tpu.dot_dimension_numbers<[1], [0], [0], [1], [0, 0, 1, 1], [], []>} : vector<256x128xbf16>, vector<128x128xbf16>, vector<256x128xf32> -> vector<256x128xf32>
    %22 = arith.extf %0 : vector<256x128xbf16> to vector<256x128xf32>
    %23 = arith.addf %22, %21 : vector<256x128xf32>
    %c0_12 = arith.constant 0 : index
    %c0_13 = arith.constant 0 : index
    %24 = vector.load %arg5[%c0_12, %c0_13] : memref<1x128xf32, #tpu.memory_space<vmem>>, vector<1x128xf32>
    %25 = vector.broadcast %24 : vector<1x128xf32> to vector<256x128xf32>
    %26 = arith.addf %23, %25 : vector<256x128xf32>
    %c0_14 = arith.constant 0 : index
    %c0_15 = arith.constant 0 : index
    %27 = vector.load %arg6[%c0_14, %c0_15] : memref<256x128xf32, #tpu.memory_space<vmem>>, vector<256x128xf32>
    tpu.vector_store %arg6[%c0_14, %c0_15], %26 {strides = array<i32>} : memref<256x128xf32, #tpu.memory_space<vmem>>, vector<256x128xf32>,
    return
  }
  func.func @transform_0(%arg0: i32) -> (i32, i32) {
    %c0_i32 = arith.constant 0 : i32
    %c0_i32_0 = arith.constant 0 : i32
    return %arg0, %c0_i32 : i32, i32
  }
  func.func @transform_1(%arg0: i32) -> (i32, i32) {
    %c0_i32 = arith.constant 0 : i32
    %c0_i32_0 = arith.constant 0 : i32
    %c0_i32_1 = arith.constant 0 : i32
    return %c0_i32, %c0_i32_0 : i32, i32
  }
  func.func @transform_2(%arg0: i32) -> (i32, i32) {
    %c0_i32 = arith.constant 0 : i32
    %c0_i32_0 = arith.constant 0 : i32
    %c0_i32_1 = arith.constant 0 : i32
    return %c0_i32, %c0_i32_0 : i32, i32
  }
  func.func @transform_3(%arg0: i32) -> (i32, i32) {
    %c0_i32 = arith.constant 0 : i32
    %c0_i32_0 = arith.constant 0 : i32
    %c0_i32_1 = arith.constant 0 : i32
    return %c0_i32, %c0_i32_0 : i32, i32
  }
  func.func @transform_4(%arg0: i32) -> (i32, i32) {
    %c0_i32 = arith.constant 0 : i32
    %c0_i32_0 = arith.constant 0 : i32
    %c0_i32_1 = arith.constant 0 : i32
    return %c0_i32, %c0_i32_0 : i32, i32
  }
  func.func @transform_5(%arg0: i32) -> (i32, i32) {
    %c0_i32 = arith.constant 0 : i32
    %c0_i32_0 = arith.constant 0 : i32
    return %arg0, %c0_i32 : i32, i32
  }
}

</mosaic_0001>

<llo_original>
// kernel: tpu_custom_call.1
$region0: #{tpu_custom_call.1}
  #allocation0 [shape = 'u32[]', space=smem, size = 0x4, offset = 0x4, fixed_abs, tag = 'smem constant byte address 0x4 - core index']
  #allocation1 [shape = 'u32[144,128]{1,0:T(1,128)}', space=vmem, size = 0x12000, scoped, tag = 'internal scratch']
  %s0 = inlined_call_operand.hbm [shape: bf16[512,128], index: 0, kind: input, shape index: {}]
  %s1 = inlined_call_operand.hbm [shape: bf16[128,128], index: 1, kind: input, shape index: {}]
  %s2 = inlined_call_operand.vmem [shape: f32[1,128], index: 2, kind: input, shape index: {}]
  %s3 = inlined_call_operand.hbm [shape: bf16[128,128], index: 3, kind: input, shape index: {}]
  %s4 = inlined_call_operand.vmem [shape: f32[1,128], index: 4, kind: input, shape index: {}]
  %s5 = inlined_call_operand.hbm [shape: f32[512,128], index: 5, kind: output, shape index: {}]
  %s6 = sld [smem:[#allocation0]]
  $region65: #{tpu_custom_call.1} parent=0
    _
  %s8 = ssub.s32 1, %s6
  %s9 = scalar_select 0, %s8, %s6
  $region1: #{tpu_custom_call.1} parent=0
    #allocation2 [shape = 'u8[131072]{0}', space=vmem, size = 0x20000, scoped, tag = 'input window, operand 0']
    #allocation3 [shape = 's32[2]{0}', space=sflag, size = 0x8, scoped, tag = 'scoped memory for tpu_custom_call.1']
    #allocation4 [shape = 's32[2]{0}', space=sflag, size = 0x8, scoped, tag = 'scoped memory for tpu_custom_call.1']
    #allocation5 [shape = 'u8[32768]{0}', space=vmem, size = 0x8000, scoped, tag = 'input window, operand 1, single buffered']
    #allocation6 [shape = 's32[1]{0}', space=sflag, size = 0x4, scoped, tag = 'scoped memory for tpu_custom_call.1']
    #allocation7 [shape = 'u8[32768]{0}', space=vmem, size = 0x8000, scoped, tag = 'input window, operand 3, single buffered']
    #allocation8 [shape = 'u8[262144]{0}', space=vmem, size = 0x40000, scoped, tag = 'output window, operand 0']
    %10 = vsyncpa [#allocation3], 0
    %s11 = scalar_lea.sflag [#allocation3], 1
    %12 = vsyncpa %s11, 0
    %13 = vsyncpa [#allocation6], 0
    %14 = vsyncpa [#allocation4], 0
    %s15 = scalar_lea.sflag [#allocation4], 1
    %16 = vsyncpa %s15, 0
    loop: start=0, step=1, limit=4
    $region2: #{tpu_custom_call.1} parent=1 // loop_pre_header
      _
    $region3: #{tpu_custom_call.1} parent=1 // loop_header
      %s18 = sphi 0, %s22
      %p19 = scmp.ge.s32.totalorder %s18, 4
      %s28 = sphi 0, %s30
      %s31 = sphi 0, %s28
      %s32 = sphi 0, %s31
      %s48 = sphi 0, %s32
      %s52 = sphi 0, %s52
      %s54 = sphi 0, %s52
      %s55 = sphi 0, %s54
      %s69 = sphi 0, %s55
      %s73 = sphi 0, %s73
      %s75 = sphi 0, %s73
      %s76 = sphi 0, %s75
      %s90 = sphi 0, %s76
      %s94 = sphi 0, %s94
      %s96 = sphi 0, %s94
      %s97 = sphi 0, %s96
      %s111 = sphi 0, %s97
      %s115 = sphi 0, %s115
      %s117 = sphi 0, %s115
      %s118 = sphi 0, %s117
      %s132 = sphi 0, %s118
      %s138 = sphi 0, %s140
      %s141 = sphi 0, %s138
      %s142 = sphi 0, %s141
      %s158 = sphi 0, %s142
    $region4: #{tpu_custom_call.1} parent=1 // loop_header_branch
      %21 = sbr.rel (%p19) target = $region8
    $region5: #{tpu_custom_call.1} parent=1 // loop_body
      %s23 = ssub.s32 %s18, 1
      %s24 = ssub.s32 %s18, 2
      %s25 = sadd.s32 %s18, 1
      %s26 = ssub.s32 %s18, %s25
      %p27 = scmp.eq.s32.totalorder %s26, 0
      %s29 = sadd.s32 %s28, 1
      %s30 = scalar_select %p27, %s28, %s29
      %p33 = pneg %p27
      %p34 = scmp.eq.s32.totalorder %s18, 1
      %p35 = por %p33, %p34
      %p36 = scmp.ne.s32.totalorder %s28, %s31
      %p37 = scmp.eq.s32.totalorder %s18, 0
      %p38 = por %p36, %p37
      %p39 = scmp.ne.s32.totalorder %s28, %s31
      %p40 = scmp.eq.s32.totalorder %s23, 1
      %p41 = por %p39, %p40
      %p42 = scmp.ne.s32.totalorder %s31, %s32
      %p43 = scmp.eq.s32.totalorder %s23, 0
      %p44 = por %p42, %p43
      %p45 = scmp.ne.s32.totalorder %s31, %s32
      %p46 = scmp.eq.s32.totalorder %s24, 1
      %p47 = por %p45, %p46
      %p49 = scmp.ne.s32.totalorder %s32, %s48
      %p50 = scmp.eq.s32.totalorder %s24, 0
      %p51 = por %p49, %p50
      %s53 = sadd.s32 %s52, 1
      %p56 = scmp.eq.s32.totalorder %s18, 1
      %p57 = scmp.ne.s32.totalorder %s52, %s54
      %p58 = scmp.eq.s32.totalorder %s18, 0
      %p59 = por %p57, %p58
      %p60 = scmp.ne.s32.totalorder %s52, %s54
      %p61 = scmp.eq.s32.totalorder %s23, 1
      %p62 = por %p60, %p61
      %p63 = scmp.ne.s32.totalorder %s54, %s55
      %p64 = scmp.eq.s32.totalorder %s23, 0
      %p65 = por %p63, %p64
      %p66 = scmp.ne.s32.totalorder %s54, %s55
      %p67 = scmp.eq.s32.totalorder %s24, 1
      %p68 = por %p66, %p67
      %p70 = scmp.ne.s32.totalorder %s55, %s69
      %p71 = scmp.eq.s32.totalorder %s24, 0
      %p72 = por %p70, %p71
      %s74 = sadd.s32 %s73, 1
      %p77 = scmp.eq.s32.totalorder %s18, 1
      %p78 = scmp.ne.s32.totalorder %s73, %s75
      %p79 = scmp.eq.s32.totalorder %s18, 0
      %p80 = por %p78, %p79
      %p81 = scmp.ne.s32.totalorder %s73, %s75
      %p82 = scmp.eq.s32.totalorder %s23, 1
      %p83 = por %p81, %p82
      %p84 = scmp.ne.s32.totalorder %s75, %s76
      %p85 = scmp.eq.s32.totalorder %s23, 0
      %p86 = por %p84, %p85
      %p87 = scmp.ne.s32.totalorder %s75, %s76
      %p88 = scmp.eq.s32.totalorder %s24, 1
      %p89 = por %p87, %p88
      %p91 = scmp.ne.s32.totalorder %s76, %s90
      %p92 = scmp.eq.s32.totalorder %s24, 0
      %p93 = por %p91, %p92
      %s95 = sadd.s32 %s94, 1
      %p98 = scmp.eq.s32.totalorder %s18, 1
      %p99 = scmp.ne.s32.totalorder %s94, %s96
      %p100 = scmp.eq.s32.totalorder %s18, 0
      %p101 = por %p99, %p100
      %p102 = scmp.ne.s32.totalorder %s94, %s96
      %p103 = scmp.eq.s32.totalorder %s23, 1
      %p104 = por %p102, %p103
      %p105 = scmp.ne.s32.totalorder %s96, %s97
      %p106 = scmp.eq.s32.totalorder %s23, 0
      %p107 = por %p105, %p106
      %p108 = scmp.ne.s32.totalorder %s96, %s97
      %p109 = scmp.eq.s32.totalorder %s24, 1
      %p110 = por %p108, %p109
      %p112 = scmp.ne.s32.totalorder %s97, %s111
      %p113 = scmp.eq.s32.totalorder %s24, 0
      %p114 = por %p112, %p113
      %s116 = sadd.s32 %s115, 1
      %p119 = scmp.eq.s32.totalorder %s18, 1
      %p120 = scmp.ne.s32.totalorder %s115, %s117
      %p121 = scmp.eq.s32.totalorder %s18, 0
      %p122 = por %p120, %p121
      %p123 = scmp.ne.s32.totalorder %s115, %s117
      %p124 = scmp.eq.s32.totalorder %s23, 1
      %p125 = por %p123, %p124
      %p126 = scmp.ne.s32.totalorder %s117, %s118
      %p127 = scmp.eq.s32.totalorder %s23, 0
      %p128 = por %p126, %p127
      %p129 = scmp.ne.s32.totalorder %s117, %s118
      %p130 = scmp.eq.s32.totalorder %s24, 1
      %p131 = por %p129, %p130
      %p133 = scmp.ne.s32.totalorder %s118, %s132
      %p134 = scmp.eq.s32.totalorder %s24, 0
      %p135 = por %p133, %p134
      %s136 = ssub.s32 %s18, %s25
      %p137 = scmp.eq.s32.totalorder %s136, 0
      %s139 = sadd.s32 %s138, 1
      %s140 = scalar_select %p137, %s138, %s139
      %p143 = pneg %p137
      %p144 = scmp.eq.s32.totalorder %s18, 1
      %p145 = por %p143, %p144
      %p146 = scmp.ne.s32.totalorder %s138, %s141
      %p147 = scmp.eq.s32.totalorder %s18, 0
      %p148 = por %p146, %p147
      %p149 = scmp.ne.s32.totalorder %s138, %s141
      %p150 = scmp.eq.s32.totalorder %s23, 1
      %p151 = por %p149, %p150
      %p152 = scmp.ne.s32.totalorder %s141, %s142
      %p153 = scmp.eq.s32.totalorder %s23, 0
      %p154 = por %p152, %p153
      %p155 = scmp.ne.s32.totalorder %s141, %s142
      %p156 = scmp.eq.s32.totalorder %s24, 1
      %p157 = por %p155, %p156
      %p159 = scmp.ne.s32.totalorder %s142, %s158
      %p160 = scmp.eq.s32.totalorder %s24, 0
      %p161 = por %p159, %p160
      %p162 = scmp.le.s32.totalorder 1, %s18
      %p163 = scmp.lt.s32.totalorder %s18, 3
      %p164 = pnand %p162, %p163
      %p165 = pneg %p164
      // Predicated region
      $region9: #{tpu_custom_call.1} parent=5 // pred_check
        _
      $region10: #{tpu_custom_call.1} parent=5 // pred_check_branch
        %167 = sbr.rel (%p164) target = $region12
      $region11: #{tpu_custom_call.1} parent=5 // pred_region
        %s168 = ssub.s32 %s18, 1
        // Predicated region
        $region13: #{tpu_custom_call.1} parent=11 // pred_check
          %p169 = pneg %p65
        $region14: #{tpu_custom_call.1} parent=11 // pred_check_branch
          %171 = sbr.rel (%p169) target = $region16
        $region15: #{tpu_custom_call.1} parent=11 // pred_region
          %s173 = ssub.s32 1024, 1024
          %174 = vsyncadd [#allocation6], %s173
          %s175 = sshll.u32 [#allocation5], 4
          %s176 = int_to_ptr.vmem [resolvable:$true] %s175
          %181 = dma.hbm_to_vmem [thread:$0]  %s1, 1024, %s176, [#allocation6], 64, 64, 4
        $region16: #{tpu_custom_call.1} parent=11 // pred_fallthru
          _
        // Predicated region
        $region17: #{tpu_custom_call.1} parent=11 // pred_check
          %p182 = pneg %p86
        $region18: #{tpu_custom_call.1} parent=11 // pred_check_branch
          %184 = sbr.rel (%p182) target = $region20
        $region19: #{tpu_custom_call.1} parent=11 // pred_region
          _
        $region20: #{tpu_custom_call.1} parent=11 // pred_fallthru
          _
        // Predicated region
        $region21: #{tpu_custom_call.1} parent=11 // pred_check
          %p185 = pneg %p107
        $region22: #{tpu_custom_call.1} parent=11 // pred_check_branch
          %187 = sbr.rel (%p185) target = $region24
        $region23: #{tpu_custom_call.1} parent=11 // pred_region
          %s189 = ssub.s32 1024, 1024
          %190 = vsyncadd [#allocation6], %s189
          %s191 = sshll.u32 [#allocation7], 4
          %s192 = int_to_ptr.vmem [resolvable:$true] %s191
          %197 = dma.hbm_to_vmem [thread:$0]  %s3, 1024, %s192, [#allocation6], 64, 64, 4
        $region24: #{tpu_custom_call.1} parent=11 // pred_fallthru
          _
        // Predicated region
        $region25: #{tpu_custom_call.1} parent=11 // pred_check
          %p198 = pneg %p128
        $region26: #{tpu_custom_call.1} parent=11 // pred_check_branch
          %200 = sbr.rel (%p198) target = $region28
        $region27: #{tpu_custom_call.1} parent=11 // pred_region
          _
        $region28: #{tpu_custom_call.1} parent=11 // pred_fallthru
          _
      $region12: #{tpu_custom_call.1} parent=5 // pred_fallthru
        _
      %p201 = scmp.lt.s32.totalorder %s18, 2
      // Predicated region
      $region29: #{tpu_custom_call.1} parent=5 // pred_check
        %p202 = pneg %p201
      $region30: #{tpu_custom_call.1} parent=5 // pred_check_branch
        %204 = sbr.rel (%p202) target = $region32
      $region31: #{tpu_custom_call.1} parent=5 // pred_region
        // Predicated region
        $region33: #{tpu_custom_call.1} parent=31 // pred_check
          %p205 = pneg %p38
        $region34: #{tpu_custom_call.1} parent=31 // pred_check_branch
          %207 = sbr.rel (%p205) target = $region36
        $region35: #{tpu_custom_call.1} parent=31 // pred_region
          %s208 = sand.u32 %s28, 1
          %s209 = scalar_lea.sflag [#allocation3], %s208
          %s210 = sand.u32 %s28, 1
          %s211 = smul.addr %s210, 128
          %s212 = scalar_lea.vmem [#allocation2], %s211
          %s213 = smul.u32 32, %s18
          %s215 = ssub.s32 2048, 2048
          %216 = vsyncadd %s209, %s215
          %s217 = smul.addr %s213, 64
          %s218 = scalar_lea.hbm %s0, %s217
          %s219 = sshll.u32 %s212, 4
          %s220 = int_to_ptr.vmem [resolvable:$true] %s219
          %225 = dma.hbm_to_vmem [thread:$0]  %s218, 2048, %s220, %s209, 64, 64, 4
        $region36: #{tpu_custom_call.1} parent=31 // pred_fallthru
          _
      $region32: #{tpu_custom_call.1} parent=5 // pred_fallthru
        _
      %p226 = scmp.le.s32.totalorder 1, %s18
      %p227 = scmp.lt.s32.totalorder %s18, 3
      %p228 = pnand %p226, %p227
      %p229 = pneg %p228
      // Predicated region
      $region37: #{tpu_custom_call.1} parent=5 // pred_check
        _
      $region38: #{tpu_custom_call.1} parent=5 // pred_check_branch
        %231 = sbr.rel (%p228) target = $region40
      $region39: #{tpu_custom_call.1} parent=5 // pred_region
        %s232 = ssub.s32 %s18, 1
        %s233 = sand.u32 %s31, 1
        %s234 = scalar_lea.sflag [#allocation3], %s233
        %s235 = sand.u32 %s31, 1
        %s236 = smul.addr %s235, 128
        %s237 = scalar_lea.vmem [#allocation2], %s236
        // Predicated region
        $region41: #{tpu_custom_call.1} parent=39 // pred_check
          %p238 = pneg %p44
        $region42: #{tpu_custom_call.1} parent=39 // pred_check_branch
          %240 = sbr.rel (%p238) target = $region44
        $region43: #{tpu_custom_call.1} parent=39 // pred_region
          %241 = dma.done %s234, 2048
        $region44: #{tpu_custom_call.1} parent=39 // pred_fallthru
          _
        // Predicated region
        $region45: #{tpu_custom_call.1} parent=39 // pred_check
          %p242 = pneg %p65
        $region46: #{tpu_custom_call.1} parent=39 // pred_check_branch
          %244 = sbr.rel (%p242) target = $region48
        $region47: #{tpu_custom_call.1} parent=39 // pred_region
          %245 = dma.done [#allocation6], 1024
        $region48: #{tpu_custom_call.1} parent=39 // pred_fallthru
          _
        // Predicated region
        $region49: #{tpu_custom_call.1} parent=39 // pred_check
          %p246 = pneg %p107
        $region50: #{tpu_custom_call.1} parent=39 // pred_check_branch
          %248 = sbr.rel (%p246) target = $region52
        $region51: #{tpu_custom_call.1} parent=39 // pred_region
          %249 = dma.done [#allocation6], 1024
        $region52: #{tpu_custom_call.1} parent=39 // pred_fallthru
          _
        %s250 = sand.u32 %s31, 1
        %s251 = scalar_lea.sflag [#allocation3], %s250
        %s252 = sand.u32 %s31, 1
        %s253 = smul.addr %s252, 128
        %s254 = scalar_lea.vmem [#allocation2], %s253
        %p255 = pneg %p44
        %p256 = pneg %p41
        %p257 = pneg %p65
        %p258 = pneg %p62
        %p259 = pneg %p86
        %p260 = pneg %p83
        %p261 = pneg %p107
        %p262 = pneg %p104
        %p263 = pneg %p128
        %p264 = pneg %p125
        %p265 = pneg %p154
        %p266 = pneg %p151
        %s267 = sand.u32 %s141, 1
        %s268 = scalar_lea.sflag [#allocation4], %s267
        %s269 = sand.u32 %s141, 1
        %s270 = smul.addr %s269, 256
        %s271 = scalar_lea.vmem [#allocation8], %s270
        %s272 = smul.u32 32, %s23
        %s273 = smul.u32 32, %s23
        %v275 = vld [vmem:[%s237] sm:$0xf]
        %v276 = vld [vmem:[%s237 + $0x4] sm:$0xf]
        %v277 = vld [vmem:[%s237 + $0x8] sm:$0xf]
        %v278 = vld [vmem:[%s237 + $0xc] sm:$0xf]
        %v279 = vld [vmem:[%s237 + $0x10] sm:$0xf]
        %v280 = vld [vmem:[%s237 + $0x14] sm:$0xf]
        %v281 = vld [vmem:[%s237 + $0x18] sm:$0xf]
        %v282 = vld [vmem:[%s237 + $0x1c] sm:$0xf]
        %v283 = vld [vmem:[%s237 + $0x20] sm:$0xf]
        %v284 = vld [vmem:[%s237 + $0x24] sm:$0xf]
        %v285 = vld [vmem:[%s237 + $0x28] sm:$0xf]
        %v286 = vld [vmem:[%s237 + $0x2c] sm:$0xf]
        %v287 = vld [vmem:[%s237 + $0x30] sm:$0xf]
        %v288 = vld [vmem:[%s237 + $0x34] sm:$0xf]
        %v289 = vld [vmem:[%s237 + $0x38] sm:$0xf]
        %v290 = vld [vmem:[%s237 + $0x3c] sm:$0xf]
        %v291 = vld [vmem:[%s237 + $0x40] sm:$0xf]
        %v292 = vld [vmem:[%s237 + $0x44] sm:$0xf]
        %v293 = vld [vmem:[%s237 + $0x48] sm:$0xf]
        %v294 = vld [vmem:[%s237 + $0x4c] sm:$0xf]
        %v295 = vld [vmem:[%s237 + $0x50] sm:$0xf]
        %v296 = vld [vmem:[%s237 + $0x54] sm:$0xf]
        %v297 = vld [vmem:[%s237 + $0x58] sm:$0xf]
        %v298 = vld [vmem:[%s237 + $0x5c] sm:$0xf]
        %v299 = vld [vmem:[%s237 + $0x60] sm:$0xf]
        %v300 = vld [vmem:[%s237 + $0x64] sm:$0xf]
        %v301 = vld [vmem:[%s237 + $0x68] sm:$0xf]
        %v302 = vld [vmem:[%s237 + $0x6c] sm:$0xf]
        %v303 = vld [vmem:[%s237 + $0x70] sm:$0xf]
        %v304 = vld [vmem:[%s237 + $0x74] sm:$0xf]
        %v305 = vld [vmem:[%s237 + $0x78] sm:$0xf]
        %v306 = vld [vmem:[%s237 + $0x7c] sm:$0xf]
        %v307 = vld [vmem:[#allocation5] sm:$0xf]
        %v308 = vld [vmem:[#allocation5 + $0x4] sm:$0xf]
        %v309 = vld [vmem:[#allocation5 + $0x8] sm:$0xf]
        %v310 = vld [vmem:[#allocation5 + $0xc] sm:$0xf]
        %v311 = vld [vmem:[#allocation5 + $0x10] sm:$0xf]
        %v312 = vld [vmem:[#allocation5 + $0x14] sm:$0xf]
        %v313 = vld [vmem:[#allocation5 + $0x18] sm:$0xf]
        %v314 = vld [vmem:[#allocation5 + $0x1c] sm:$0xf]
        %v315 = vld [vmem:[#allocation5 + $0x20] sm:$0xf]
        %v316 = vld [vmem:[#allocation5 + $0x24] sm:$0xf]
        %v317 = vld [vmem:[#allocation5 + $0x28] sm:$0xf]
        %v318 = vld [vmem:[#allocation5 + $0x2c] sm:$0xf]
        %v319 = vld [vmem:[#allocation5 + $0x30] sm:$0xf]
        %v320 = vld [vmem:[#allocation5 + $0x34] sm:$0xf]
        %v321 = vld [vmem:[#allocation5 + $0x38] sm:$0xf]
        %v322 = vld [vmem:[#allocation5 + $0x3c] sm:$0xf]
        %v323 = vld [vmem:[%s2] sm:$0x1]
        %v325 = vlaneseq
        %v326 = vshrl.u32 %v325, 7
        %v327 = vsub.s32 0, %v326
        %v328 = vrot.slane %v323, %v327
        %v362 = vunpack.c.l.b16 %v275
        %v363 = vunpack.c.l.b16 %v276
        %v364 = vunpack.c.l.b16 %v277
        %v365 = vunpack.c.l.b16 %v278
        %v366 = vunpack.c.l.b16 %v279
        %v367 = vunpack.c.l.b16 %v280
        %v368 = vunpack.c.l.b16 %v281
        %v369 = vunpack.c.l.b16 %v282
        %v370 = vunpack.c.l.b16 %v283
        %v371 = vunpack.c.l.b16 %v284
        %v372 = vunpack.c.l.b16 %v285
        %v373 = vunpack.c.l.b16 %v286
        %v374 = vunpack.c.l.b16 %v287
        %v375 = vunpack.c.l.b16 %v288
        %v376 = vunpack.c.l.b16 %v289
        %v377 = vunpack.c.l.b16 %v290
        %v378 = vunpack.c.l.b16 %v291
        %v379 = vunpack.c.l.b16 %v292
        %v380 = vunpack.c.l.b16 %v293
        %v381 = vunpack.c.l.b16 %v294
        %v382 = vunpack.c.l.b16 %v295
        %v383 = vunpack.c.l.b16 %v296
        %v384 = vunpack.c.l.b16 %v297
        %v385 = vunpack.c.l.b16 %v298
        %v386 = vunpack.c.l.b16 %v299
        %v387 = vunpack.c.l.b16 %v300
        %v388 = vunpack.c.l.b16 %v301
        %v389 = vunpack.c.l.b16 %v302
        %v390 = vunpack.c.l.b16 %v303
        %v391 = vunpack.c.l.b16 %v304
        %v392 = vunpack.c.l.b16 %v305
        %v393 = vunpack.c.l.b16 %v306
        %v394 = vpack.c.b16 %v363, %v362
        %v395 = vpack.c.b16 %v365, %v364
        %v396 = vpack.c.b16 %v367, %v366
        %v397 = vpack.c.b16 %v369, %v368
        %v398 = vpack.c.b16 %v371, %v370
        %v399 = vpack.c.b16 %v373, %v372
        %v400 = vpack.c.b16 %v375, %v374
        %v401 = vpack.c.b16 %v377, %v376
        %v402 = vpack.c.b16 %v379, %v378
        %v403 = vpack.c.b16 %v381, %v380
        %v404 = vpack.c.b16 %v383, %v382
        %v405 = vpack.c.b16 %v385, %v384
        %v406 = vpack.c.b16 %v387, %v386
        %v407 = vpack.c.b16 %v389, %v388
        %v408 = vpack.c.b16 %v391, %v390
        %v409 = vpack.c.b16 %v393, %v392
        %v442 = vunpack.c.l.b16 %v307
        %v443 = vunpack.c.l.b16 %v308
        %v444 = vunpack.c.l.b16 %v309
        %v445 = vunpack.c.l.b16 %v310
        %v446 = vunpack.c.l.b16 %v311
        %v447 = vunpack.c.l.b16 %v312
        %v448 = vunpack.c.l.b16 %v313
        %v449 = vunpack.c.l.b16 %v314
        %v450 = vunpack.c.l.b16 %v315
        %v451 = vunpack.c.l.b16 %v316
        %v452 = vunpack.c.l.b16 %v317
        %v453 = vunpack.c.l.b16 %v318
        %v454 = vunpack.c.l.b16 %v319
        %v455 = vunpack.c.l.b16 %v320
        %v456 = vunpack.c.l.b16 %v321
        %v457 = vunpack.c.l.b16 %v322
        %v458 = vpack.c.b16 %v443, %v442
        %v459 = vpack.c.b16 %v445, %v444
        %v460 = vpack.c.b16 %v447, %v446
        %v461 = vpack.c.b16 %v449, %v448
        %v462 = vpack.c.b16 %v451, %v450
        %v463 = vpack.c.b16 %v453, %v452
        %v464 = vpack.c.b16 %v455, %v454
        %v465 = vpack.c.b16 %v457, %v456
        %474 = vmatprep.subr.bf16.mxu0 0
        %475 = vmatpush1.bf16.msra.mxu0 %v458
        %476 = vmatprep.subr.bf16.mxu0 0
        %477 = vmatpush1.bf16.msra.mxu0 %v459
        %478 = vmatprep.subr.bf16.mxu0 0
        %479 = vmatpush1.bf16.msra.mxu0 %v460
        %480 = vmatprep.subr.bf16.mxu0 0
        %481 = vmatpush1.bf16.msra.mxu0 %v461
        %482 = vmatprep.subr.bf16.mxu0 0
        %483 = vmatpush1.bf16.msra.mxu0 %v462
        %484 = vmatprep.subr.bf16.mxu0 0
        %485 = vmatpush1.bf16.msra.mxu0 %v463
        %486 = vmatprep.subr.bf16.mxu0 0
        %487 = vmatpush1.bf16.msra.mxu0 %v464
        %488 = vmatprep.subr.bf16.mxu0 0
        %489 = vmatpush1.bf16.msra.mxu0 %v465
        %490 = vmatprep.subr.bf16.mxu0 0
        %491 = vmatpush1.bf16.msra.mxu0 0
        %492 = vmatprep.subr.bf16.mxu0 0
        %493 = vmatpush1.bf16.msra.mxu0 0
        %494 = vmatprep.subr.bf16.mxu0 0
        %495 = vmatpush1.bf16.msra.mxu0 0
        %496 = vmatprep.subr.bf16.mxu0 0
        %497 = vmatpush1.bf16.msra.mxu0 0
        %498 = vmatprep.subr.bf16.mxu0 0
        %499 = vmatpush1.bf16.msra.mxu0 0
        %500 = vmatprep.subr.bf16.mxu0 0
        %501 = vmatpush1.bf16.msra.mxu0 0
        %502 = vmatprep.subr.bf16.mxu0 0
        %503 = vmatpush1.bf16.msra.mxu0 0
        %504 = vmatprep.subr.bf16.mxu0 0
        %505 = vmatpush1.bf16.msra.mxu0 0
        %506 = vmatprep.mubr.bf16.mxu0 0
        %507 = vmatmul.mubr.bf16.gmra.mrb[0].mxu0 %v394
        %v508 = vpop.f32.mrb[0].mxu0
        %v509 = vadd.f32 %v328, %v508
        %v510 = vpop.f32.mrb[0].mxu0
        %v511 = vpop.f32.mrb[0].mxu0
        %v512 = vadd.f32 %v328, %v511
        %v513 = vpop.f32.mrb[0].mxu0
        %514 = vmatprep.mubr.bf16.mxu0 0
        %515 = vmatmul.mubr.bf16.gmra.mrb[0].mxu0 %v395
        %v516 = vpop.f32.mrb[0].mxu0
        %v517 = vadd.f32 %v328, %v516
        %v518 = vpop.f32.mrb[0].mxu0
        %v519 = vpop.f32.mrb[0].mxu0
        %v520 = vadd.f32 %v328, %v519
        %v521 = vpop.f32.mrb[0].mxu0
        %522 = vmatprep.mubr.bf16.mxu0 0
        %523 = vmatmul.mubr.bf16.gmra.mrb[0].mxu0 %v396
        %v524 = vpop.f32.mrb[0].mxu0
        %v525 = vadd.f32 %v328, %v524
        %v526 = vpop.f32.mrb[0].mxu0
        %v527 = vpop.f32.mrb[0].mxu0
        %v528 = vadd.f32 %v328, %v527
        %v529 = vpop.f32.mrb[0].mxu0
        %530 = vmatprep.mubr.bf16.mxu0 0
        %531 = vmatmul.mubr.bf16.gmra.mrb[0].mxu0 %v397
        %v532 = vpop.f32.mrb[0].mxu0
        %v533 = vadd.f32 %v328, %v532
        %v534 = vpop.f32.mrb[0].mxu0
        %v535 = vpop.f32.mrb[0].mxu0
        %v536 = vadd.f32 %v328, %v535
        %v537 = vpop.f32.mrb[0].mxu0
        %538 = vmatprep.mubr.bf16.mxu0 0
        %539 = vmatmul.mubr.bf16.gmra.mrb[0].mxu0 %v398
        %v540 = vpop.f32.mrb[0].mxu0
        %v541 = vadd.f32 %v328, %v540
        %v542 = vpop.f32.mrb[0].mxu0
        %v543 = vpop.f32.mrb[0].mxu0
        %v544 = vadd.f32 %v328, %v543
        %v545 = vpop.f32.mrb[0].mxu0
        %546 = vmatprep.mubr.bf16.mxu0 0
        %547 = vmatmul.mubr.bf16.gmra.mrb[0].mxu0 %v399
        %v548 = vpop.f32.mrb[0].mxu0
        %v549 = vadd.f32 %v328, %v548
        %v550 = vpop.f32.mrb[0].mxu0
        %v551 = vpop.f32.mrb[0].mxu0
        %v552 = vadd.f32 %v328, %v551
        %v553 = vpop.f32.mrb[0].mxu0
        %554 = vmatprep.mubr.bf16.mxu0 0
        %555 = vmatmul.mubr.bf16.gmra.mrb[0].mxu0 %v400
        %v556 = vpop.f32.mrb[0].mxu0
        %v557 = vadd.f32 %v328, %v556
        %v558 = vpop.f32.mrb[0].mxu0
        %v559 = vpop.f32.mrb[0].mxu0
        %v560 = vadd.f32 %v328, %v559
        %v561 = vpop.f32.mrb[0].mxu0
        %562 = vmatprep.mubr.bf16.mxu0 0
        %563 = vmatmul.mubr.bf16.gmra.mrb[0].mxu0 %v401
        %v564 = vpop.f32.mrb[0].mxu0
        %v565 = vadd.f32 %v328, %v564
        %v566 = vpop.f32.mrb[0].mxu0
        %v567 = vpop.f32.mrb[0].mxu0
        %v568 = vadd.f32 %v328, %v567
        %v569 = vpop.f32.mrb[0].mxu0
        %570 = vmatprep.mubr.bf16.mxu0 0
        %571 = vmatmul.mubr.bf16.gmra.mrb[0].mxu0 %v402
        %v572 = vpop.f32.mrb[0].mxu0
        %v573 = vadd.f32 %v328, %v572
        %v574 = vpop.f32.mrb[0].mxu0
        %v575 = vpop.f32.mrb[0].mxu0
        %v576 = vadd.f32 %v328, %v575
        %v577 = vpop.f32.mrb[0].mxu0
        %578 = vmatprep.mubr.bf16.mxu0 0
        %579 = vmatmul.mubr.bf16.gmra.mrb[0].mxu0 %v403
        %v580 = vpop.f32.mrb[0].mxu0
        %v581 = vadd.f32 %v328, %v580
        %v582 = vpop.f32.mrb[0].mxu0
        %v583 = vpop.f32.mrb[0].mxu0
        %v584 = vadd.f32 %v328, %v583
        %v585 = vpop.f32.mrb[0].mxu0
        %586 = vmatprep.mubr.bf16.mxu0 0
        %587 = vmatmul.mubr.bf16.gmra.mrb[0].mxu0 %v404
        %v588 = vpop.f32.mrb[0].mxu0
        %v589 = vadd.f32 %v328, %v588
        %v590 = vpop.f32.mrb[0].mxu0
        %v591 = vpop.f32.mrb[0].mxu0
        %v592 = vadd.f32 %v328, %v591
        %v593 = vpop.f32.mrb[0].mxu0
        %594 = vmatprep.mubr.bf16.mxu0 0
        %595 = vmatmul.mubr.bf16.gmra.mrb[0].mxu0 %v405
        %v596 = vpop.f32.mrb[0].mxu0
        %v597 = vadd.f32 %v328, %v596
        %v598 = vpop.f32.mrb[0].mxu0
        %v599 = vpop.f32.mrb[0].mxu0
        %v600 = vadd.f32 %v328, %v599
        %v601 = vpop.f32.mrb[0].mxu0
        %602 = vmatprep.mubr.bf16.mxu0 0
        %603 = vmatmul.mubr.bf16.gmra.mrb[0].mxu0 %v406
        %v604 = vpop.f32.mrb[0].mxu0
        %v605 = vadd.f32 %v328, %v604
        %v606 = vpop.f32.mrb[0].mxu0
        %v607 = vpop.f32.mrb[0].mxu0
        %v608 = vadd.f32 %v328, %v607
        %v609 = vpop.f32.mrb[0].mxu0
        %610 = vmatprep.mubr.bf16.mxu0 0
        %611 = vmatmul.mubr.bf16.gmra.mrb[0].mxu0 %v407
        %v612 = vpop.f32.mrb[0].mxu0
        %v613 = vadd.f32 %v328, %v612
        %v614 = vpop.f32.mrb[0].mxu0
        %v615 = vpop.f32.mrb[0].mxu0
        %v616 = vadd.f32 %v328, %v615
        %v617 = vpop.f32.mrb[0].mxu0
        %618 = vmatprep.mubr.bf16.mxu0 0
        %619 = vmatmul.mubr.bf16.gmra.mrb[0].mxu0 %v408
        %v620 = vpop.f32.mrb[0].mxu0
        %v621 = vadd.f32 %v328, %v620
        %v622 = vpop.f32.mrb[0].mxu0
        %v623 = vpop.f32.mrb[0].mxu0
        %v624 = vadd.f32 %v328, %v623
        %v625 = vpop.f32.mrb[0].mxu0
        %626 = vmatprep.mubr.bf16.mxu0 0
        %627 = vmatmul.mubr.bf16.gmra.mrb[0].mxu0 %v409
        %v628 = vpop.f32.mrb[0].mxu0
        %v629 = vadd.f32 %v328, %v628
        %v630 = vpop.f32.mrb[0].mxu0
        %v631 = vpop.f32.mrb[0].mxu0
        %v632 = vadd.f32 %v328, %v631
        %v633 = vpop.f32.mrb[0].mxu0
        %634 = vdwg.mxu0
        %v635 = vmul.f32 %v509, %v509
        %v636 = vmul.f32 %v512, %v512
        %v637 = vmul.f32 %v517, %v517
        %v638 = vmul.f32 %v520, %v520
        %v639 = vmul.f32 %v525, %v525
        %v640 = vmul.f32 %v528, %v528
        %v641 = vmul.f32 %v533, %v533
        %v642 = vmul.f32 %v536, %v536
        %v643 = vmul.f32 %v541, %v541
        %v644 = vmul.f32 %v544, %v544
        %v645 = vmul.f32 %v549, %v549
        %v646 = vmul.f32 %v552, %v552
        %v647 = vmul.f32 %v557, %v557
        %v648 = vmul.f32 %v560, %v560
        %v649 = vmul.f32 %v565, %v565
        %v650 = vmul.f32 %v568, %v568
        %v651 = vmul.f32 %v573, %v573
        %v652 = vmul.f32 %v576, %v576
        %v653 = vmul.f32 %v581, %v581
        %v654 = vmul.f32 %v584, %v584
        %v655 = vmul.f32 %v589, %v589
        %v656 = vmul.f32 %v592, %v592
        %v657 = vmul.f32 %v597, %v597
        %v658 = vmul.f32 %v600, %v600
        %v659 = vmul.f32 %v605, %v605
        %v660 = vmul.f32 %v608, %v608
        %v661 = vmul.f32 %v613, %v613
        %v662 = vmul.f32 %v616, %v616
        %v663 = vmul.f32 %v621, %v621
        %v664 = vmul.f32 %v624, %v624
        %v665 = vmul.f32 %v629, %v629
        %v666 = vmul.f32 %v632, %v632
        %v667 = vmul.f32 %v509, %v635
        %v668 = vmul.f32 %v512, %v636
        %v669 = vmul.f32 %v517, %v637
        %v670 = vmul.f32 %v520, %v638
        %v671 = vmul.f32 %v525, %v639
        %v672 = vmul.f32 %v528, %v640
        %v673 = vmul.f32 %v533, %v641
        %v674 = vmul.f32 %v536, %v642
        %v675 = vmul.f32 %v541, %v643
        %v676 = vmul.f32 %v544, %v644
        %v677 = vmul.f32 %v549, %v645
        %v678 = vmul.f32 %v552, %v646
        %v679 = vmul.f32 %v557, %v647
        %v680 = vmul.f32 %v560, %v648
        %v681 = vmul.f32 %v565, %v649
        %v682 = vmul.f32 %v568, %v650
        %v683 = vmul.f32 %v573, %v651
        %v684 = vmul.f32 %v576, %v652
        %v685 = vmul.f32 %v581, %v653
        %v686 = vmul.f32 %v584, %v654
        %v687 = vmul.f32 %v589, %v655
        %v688 = vmul.f32 %v592, %v656
        %v689 = vmul.f32 %v597, %v657
        %v690 = vmul.f32 %v600, %v658
        %v691 = vmul.f32 %v605, %v659
        %v692 = vmul.f32 %v608, %v660
        %v693 = vmul.f32 %v613, %v661
        %v694 = vmul.f32 %v616, %v662
        %v695 = vmul.f32 %v621, %v663
        %v696 = vmul.f32 %v624, %v664
        %v697 = vmul.f32 %v629, %v665
        %v698 = vmul.f32 %v632, %v666
        %v699 = vmul.f32 %v667, 0.044715
        %v700 = vmul.f32 %v668, 0.044715
        %v701 = vmul.f32 %v669, 0.044715
        %v702 = vmul.f32 %v670, 0.044715
        %v703 = vmul.f32 %v671, 0.044715
        %v704 = vmul.f32 %v672, 0.044715
        %v705 = vmul.f32 %v673, 0.044715
        %v706 = vmul.f32 %v674, 0.044715
        %v707 = vmul.f32 %v675, 0.044715
        %v708 = vmul.f32 %v676, 0.044715
        %v709 = vmul.f32 %v677, 0.044715
        %v710 = vmul.f32 %v678, 0.044715
        %v711 = vmul.f32 %v679, 0.044715
        %v712 = vmul.f32 %v680, 0.044715
        %v713 = vmul.f32 %v681, 0.044715
        %v714 = vmul.f32 %v682, 0.044715
        %v715 = vmul.f32 %v683, 0.044715
        %v716 = vmul.f32 %v684, 0.044715
        %v717 = vmul.f32 %v685, 0.044715
        %v718 = vmul.f32 %v686, 0.044715
        %v719 = vmul.f32 %v687, 0.044715
        %v720 = vmul.f32 %v688, 0.044715
        %v721 = vmul.f32 %v689, 0.044715
        %v722 = vmul.f32 %v690, 0.044715
        %v723 = vmul.f32 %v691, 0.044715
        %v724 = vmul.f32 %v692, 0.044715
        %v725 = vmul.f32 %v693, 0.044715
        %v726 = vmul.f32 %v694, 0.044715
        %v727 = vmul.f32 %v695, 0.044715
        %v728 = vmul.f32 %v696, 0.044715
        %v729 = vmul.f32 %v697, 0.044715
        %v730 = vmul.f32 %v698, 0.044715
        %v731 = vadd.f32 %v509, %v699
        %v732 = vadd.f32 %v512, %v700
        %v733 = vadd.f32 %v517, %v701
        %v734 = vadd.f32 %v520, %v702
        %v735 = vadd.f32 %v525, %v703
        %v736 = vadd.f32 %v528, %v704
        %v737 = vadd.f32 %v533, %v705
        %v738 = vadd.f32 %v536, %v706
        %v739 = vadd.f32 %v541, %v707
        %v740 = vadd.f32 %v544, %v708
        %v741 = vadd.f32 %v549, %v709
        %v742 = vadd.f32 %v552, %v710
        %v743 = vadd.f32 %v557, %v711
        %v744 = vadd.f32 %v560, %v712
        %v745 = vadd.f32 %v565, %v713
        %v746 = vadd.f32 %v568, %v714
        %v747 = vadd.f32 %v573, %v715
        %v748 = vadd.f32 %v576, %v716
        %v749 = vadd.f32 %v581, %v717
        %v750 = vadd.f32 %v584, %v718
        %v751 = vadd.f32 %v589, %v719
        %v752 = vadd.f32 %v592, %v720
        %v753 = vadd.f32 %v597, %v721
        %v754 = vadd.f32 %v600, %v722
        %v755 = vadd.f32 %v605, %v723
        %v756 = vadd.f32 %v608, %v724
        %v757 = vadd.f32 %v613, %v725
        %v758 = vadd.f32 %v616, %v726
        %v759 = vadd.f32 %v621, %v727
        %v760 = vadd.f32 %v624, %v728
        %v761 = vadd.f32 %v629, %v729
        %v762 = vadd.f32 %v632, %v730
        %v763 = vmul.f32 %v731, 0.7978846
        %v764 = vmul.f32 %v732, 0.7978846
        %v765 = vmul.f32 %v733, 0.7978846
        %v766 = vmul.f32 %v734, 0.7978846
        %v767 = vmul.f32 %v735, 0.7978846
        %v768 = vmul.f32 %v736, 0.7978846
        %v769 = vmul.f32 %v737, 0.7978846
        %v770 = vmul.f32 %v738, 0.7978846
        %v771 = vmul.f32 %v739, 0.7978846
        %v772 = vmul.f32 %v740, 0.7978846
        %v773 = vmul.f32 %v741, 0.7978846
        %v774 = vmul.f32 %v742, 0.7978846
        %v775 = vmul.f32 %v743, 0.7978846
        %v776 = vmul.f32 %v744, 0.7978846
        %v777 = vmul.f32 %v745, 0.7978846
        %v778 = vmul.f32 %v746, 0.7978846
        %v779 = vmul.f32 %v747, 0.7978846
        %v780 = vmul.f32 %v748, 0.7978846
        %v781 = vmul.f32 %v749, 0.7978846
        %v782 = vmul.f32 %v750, 0.7978846
        %v783 = vmul.f32 %v751, 0.7978846
        %v784 = vmul.f32 %v752, 0.7978846
        %v785 = vmul.f32 %v753, 0.7978846
        %v786 = vmul.f32 %v754, 0.7978846
        %v787 = vmul.f32 %v755, 0.7978846
        %v788 = vmul.f32 %v756, 0.7978846
        %v789 = vmul.f32 %v757, 0.7978846
        %v790 = vmul.f32 %v758, 0.7978846
        %v791 = vmul.f32 %v759, 0.7978846
        %v792 = vmul.f32 %v760, 0.7978846
        %v793 = vmul.f32 %v761, 0.7978846
        %v794 = vmul.f32 %v762, 0.7978846
        %v795 = vtanh.pop %v763
        %v796 = vtanh.pop %v764
        %v797 = vtanh.pop %v765
        %v798 = vtanh.pop %v766
        %v799 = vtanh.pop %v767
        %v800 = vtanh.pop %v768
        %v801 = vtanh.pop %v769
        %v802 = vtanh.pop %v770
        %v803 = vtanh.pop %v771
        %v804 = vtanh.pop %v772
        %v805 = vtanh.pop %v773
        %v806 = vtanh.pop %v774
        %v807 = vtanh.pop %v775
        %v808 = vtanh.pop %v776
        %v809 = vtanh.pop %v777
        %v810 = vtanh.pop %v778
        %v811 = vtanh.pop %v779
        %v812 = vtanh.pop %v780
        %v813 = vtanh.pop %v781
        %v814 = vtanh.pop %v782
        %v815 = vtanh.pop %v783
        %v816 = vtanh.pop %v784
        %v817 = vtanh.pop %v785
        %v818 = vtanh.pop %v786
        %v819 = vtanh.pop %v787
        %v820 = vtanh.pop %v788
        %v821 = vtanh.pop %v789
        %v822 = vtanh.pop %v790
        %v823 = vtanh.pop %v791
        %v824 = vtanh.pop %v792
        %v825 = vtanh.pop %v793
        %v826 = vtanh.pop %v794
        %v827 = vadd.f32 %v795, 1.0
        %v828 = vadd.f32 %v796, 1.0
        %v829 = vadd.f32 %v797, 1.0
        %v830 = vadd.f32 %v798, 1.0
        %v831 = vadd.f32 %v799, 1.0
        %v832 = vadd.f32 %v800, 1.0
        %v833 = vadd.f32 %v801, 1.0
        %v834 = vadd.f32 %v802, 1.0
        %v835 = vadd.f32 %v803, 1.0
        %v836 = vadd.f32 %v804, 1.0
        %v837 = vadd.f32 %v805, 1.0
        %v838 = vadd.f32 %v806, 1.0
        %v839 = vadd.f32 %v807, 1.0
        %v840 = vadd.f32 %v808, 1.0
        %v841 = vadd.f32 %v809, 1.0
        %v842 = vadd.f32 %v810, 1.0
        %v843 = vadd.f32 %v811, 1.0
        %v844 = vadd.f32 %v812, 1.0
        %v845 = vadd.f32 %v813, 1.0
        %v846 = vadd.f32 %v814, 1.0
        %v847 = vadd.f32 %v815, 1.0
        %v848 = vadd.f32 %v816, 1.0
        %v849 = vadd.f32 %v817, 1.0
        %v850 = vadd.f32 %v818, 1.0
        %v851 = vadd.f32 %v819, 1.0
        %v852 = vadd.f32 %v820, 1.0
        %v853 = vadd.f32 %v821, 1.0
        %v854 = vadd.f32 %v822, 1.0
        %v855 = vadd.f32 %v823, 1.0
        %v856 = vadd.f32 %v824, 1.0
        %v857 = vadd.f32 %v825, 1.0
        %v858 = vadd.f32 %v826, 1.0
        %v859 = vmul.f32 %v827, 0.5
        %v860 = vmul.f32 %v828, 0.5
        %v861 = vmul.f32 %v829, 0.5
        %v862 = vmul.f32 %v830, 0.5
        %v863 = vmul.f32 %v831, 0.5
        %v864 = vmul.f32 %v832, 0.5
        %v865 = vmul.f32 %v833, 0.5
        %v866 = vmul.f32 %v834, 0.5
        %v867 = vmul.f32 %v835, 0.5
        %v868 = vmul.f32 %v836, 0.5
        %v869 = vmul.f32 %v837, 0.5
        %v870 = vmul.f32 %v838, 0.5
        %v871 = vmul.f32 %v839, 0.5
        %v872 = vmul.f32 %v840, 0.5
        %v873 = vmul.f32 %v841, 0.5
        %v874 = vmul.f32 %v842, 0.5
        %v875 = vmul.f32 %v843, 0.5
        %v876 = vmul.f32 %v844, 0.5
        %v877 = vmul.f32 %v845, 0.5
        %v878 = vmul.f32 %v846, 0.5
        %v879 = vmul.f32 %v847, 0.5
        %v880 = vmul.f32 %v848, 0.5
        %v881 = vmul.f32 %v849, 0.5
        %v882 = vmul.f32 %v850, 0.5
        %v883 = vmul.f32 %v851, 0.5
        %v884 = vmul.f32 %v852, 0.5
        %v885 = vmul.f32 %v853, 0.5
        %v886 = vmul.f32 %v854, 0.5
        %v887 = vmul.f32 %v855, 0.5
        %v888 = vmul.f32 %v856, 0.5
        %v889 = vmul.f32 %v857, 0.5
        %v890 = vmul.f32 %v858, 0.5
        %v891 = vmul.f32 %v509, %v859
        %v892 = vmul.f32 %v512, %v860
        %v893 = vmul.f32 %v517, %v861
        %v894 = vmul.f32 %v520, %v862
        %v895 = vmul.f32 %v525, %v863
        %v896 = vmul.f32 %v528, %v864
        %v897 = vmul.f32 %v533, %v865
        %v898 = vmul.f32 %v536, %v866
        %v899 = vmul.f32 %v541, %v867
        %v900 = vmul.f32 %v544, %v868
        %v901 = vmul.f32 %v549, %v869
        %v902 = vmul.f32 %v552, %v870
        %v903 = vmul.f32 %v557, %v871
        %v904 = vmul.f32 %v560, %v872
        %v905 = vmul.f32 %v565, %v873
        %v906 = vmul.f32 %v568, %v874
        %v907 = vmul.f32 %v573, %v875
        %v908 = vmul.f32 %v576, %v876
        %v909 = vmul.f32 %v581, %v877
        %v910 = vmul.f32 %v584, %v878
        %v911 = vmul.f32 %v589, %v879
        %v912 = vmul.f32 %v592, %v880
        %v913 = vmul.f32 %v597, %v881
        %v914 = vmul.f32 %v600, %v882
        %v915 = vmul.f32 %v605, %v883
        %v916 = vmul.f32 %v608, %v884
        %v917 = vmul.f32 %v613, %v885
        %v918 = vmul.f32 %v616, %v886
        %v919 = vmul.f32 %v621, %v887
        %v920 = vmul.f32 %v624, %v888
        %v921 = vmul.f32 %v629, %v889
        %v922 = vmul.f32 %v632, %v890
        %v923 = vpack.c.bf16 %v892, %v891
        %v924 = vpack.c.bf16 %v894, %v893
        %v925 = vpack.c.bf16 %v896, %v895
        %v926 = vpack.c.bf16 %v898, %v897
        %v927 = vpack.c.bf16 %v900, %v899
        %v928 = vpack.c.bf16 %v902, %v901
        %v929 = vpack.c.bf16 %v904, %v903
        %v930 = vpack.c.bf16 %v906, %v905
        %v931 = vpack.c.bf16 %v908, %v907
        %v932 = vpack.c.bf16 %v910, %v909
        %v933 = vpack.c.bf16 %v912, %v911
        %v934 = vpack.c.bf16 %v914, %v913
        %v935 = vpack.c.bf16 %v916, %v915
        %v936 = vpack.c.bf16 %v918, %v917
        %v937 = vpack.c.bf16 %v920, %v919
        %v938 = vpack.c.bf16 %v922, %v921
        %v939 = vld [vmem:[#allocation7] sm:$0xf]
        %v940 = vld [vmem:[#allocation7 + $0x4] sm:$0xf]
        %v941 = vld [vmem:[#allocation7 + $0x8] sm:$0xf]
        %v942 = vld [vmem:[#allocation7 + $0xc] sm:$0xf]
        %v943 = vld [vmem:[#allocation7 + $0x10] sm:$0xf]
        %v944 = vld [vmem:[#allocation7 + $0x14] sm:$0xf]
        %v945 = vld [vmem:[#allocation7 + $0x18] sm:$0xf]
        %v946 = vld [vmem:[#allocation7 + $0x1c] sm:$0xf]
        %v947 = vld [vmem:[#allocation7 + $0x20] sm:$0xf]
        %v948 = vld [vmem:[#allocation7 + $0x24] sm:$0xf]
        %v949 = vld [vmem:[#allocation7 + $0x28] sm:$0xf]
        %v950 = vld [vmem:[#allocation7 + $0x2c] sm:$0xf]
        %v951 = vld [vmem:[#allocation7 + $0x30] sm:$0xf]
        %v952 = vld [vmem:[#allocation7 + $0x34] sm:$0xf]
        %v953 = vld [vmem:[#allocation7 + $0x38] sm:$0xf]
        %v954 = vld [vmem:[#allocation7 + $0x3c] sm:$0xf]
        %v971 = vunpack.c.l.b16 %v939
        %v972 = vunpack.c.l.b16 %v940
        %v973 = vunpack.c.l.b16 %v941
        %v974 = vunpack.c.l.b16 %v942
        %v975 = vunpack.c.l.b16 %v943
        %v976 = vunpack.c.l.b16 %v944
        %v977 = vunpack.c.l.b16 %v945
        %v978 = vunpack.c.l.b16 %v946
        %v979 = vunpack.c.l.b16 %v947
        %v980 = vunpack.c.l.b16 %v948
        %v981 = vunpack.c.l.b16 %v949
        %v982 = vunpack.c.l.b16 %v950
        %v983 = vunpack.c.l.b16 %v951
        %v984 = vunpack.c.l.b16 %v952
        %v985 = vunpack.c.l.b16 %v953
        %v986 = vunpack.c.l.b16 %v954
        %v987 = vpack.c.b16 %v972, %v971
        %v988 = vpack.c.b16 %v974, %v973
        %v989 = vpack.c.b16 %v976, %v975
        %v990 = vpack.c.b16 %v978, %v977
        %v991 = vpack.c.b16 %v980, %v979
        %v992 = vpack.c.b16 %v982, %v981
        %v993 = vpack.c.b16 %v984, %v983
        %v994 = vpack.c.b16 %v986, %v985
        %1003 = vmatprep.subr.bf16.mxu0 0
        %1004 = vmatpush1.bf16.msra.mxu0 %v987
        %1005 = vmatprep.subr.bf16.mxu0 0
        %1006 = vmatpush1.bf16.msra.mxu0 %v988
        %1007 = vmatprep.subr.bf16.mxu0 0
        %1008 = vmatpush1.bf16.msra.mxu0 %v989
        %1009 = vmatprep.subr.bf16.mxu0 0
        %1010 = vmatpush1.bf16.msra.mxu0 %v990
        %1011 = vmatprep.subr.bf16.mxu0 0
        %1012 = vmatpush1.bf16.msra.mxu0 %v991
        %1013 = vmatprep.subr.bf16.mxu0 0
        %1014 = vmatpush1.bf16.msra.mxu0 %v992
        %1015 = vmatprep.subr.bf16.mxu0 0
        %1016 = vmatpush1.bf16.msra.mxu0 %v993
        %1017 = vmatprep.subr.bf16.mxu0 0
        %1018 = vmatpush1.bf16.msra.mxu0 %v994
        %1019 = vmatprep.subr.bf16.mxu0 0
        %1020 = vmatpush1.bf16.msra.mxu0 0
        %1021 = vmatprep.subr.bf16.mxu0 0
        %1022 = vmatpush1.bf16.msra.mxu0 0
        %1023 = vmatprep.subr.bf16.mxu0 0
        %1024 = vmatpush1.bf16.msra.mxu0 0
        %1025 = vmatprep.subr.bf16.mxu0 0
        %1026 = vmatpush1.bf16.msra.mxu0 0
        %1027 = vmatprep.subr.bf16.mxu0 0
        %1028 = vmatpush1.bf16.msra.mxu0 0
        %1029 = vmatprep.subr.bf16.mxu0 0
        %1030 = vmatpush1.bf16.msra.mxu0 0
        %1031 = vmatprep.subr.bf16.mxu0 0
        %1032 = vmatpush1.bf16.msra.mxu0 0
        %1033 = vmatprep.subr.bf16.mxu0 0
        %1034 = vmatpush1.bf16.msra.mxu0 0
        %1035 = vmatprep.mubr.bf16.mxu0 0
        %1036 = vmatmul.mubr.bf16.gmra.mrb[0].mxu0 %v923
        %v1037 = vpop.f32.mrb[0].mxu0
        %v1038 = vadd.f32 0.0, %v1037
        %v1039 = vpop.f32.mrb[0].mxu0
        %v1040 = vpop.f32.mrb[0].mxu0
        %v1041 = vadd.f32 0.0, %v1040
        %v1042 = vpop.f32.mrb[0].mxu0
        %1043 = vmatprep.mubr.bf16.mxu0 0
        %1044 = vmatmul.mubr.bf16.gmra.mrb[0].mxu0 %v924
        %v1045 = vpop.f32.mrb[0].mxu0
        %v1046 = vadd.f32 0.0, %v1045
        %v1047 = vpop.f32.mrb[0].mxu0
        %v1048 = vpop.f32.mrb[0].mxu0
        %v1049 = vadd.f32 0.0, %v1048
        %v1050 = vpop.f32.mrb[0].mxu0
        %1051 = vmatprep.mubr.bf16.mxu0 0
        %1052 = vmatmul.mubr.bf16.gmra.mrb[0].mxu0 %v925
        %v1053 = vpop.f32.mrb[0].mxu0
        %v1054 = vadd.f32 0.0, %v1053
        %v1055 = vpop.f32.mrb[0].mxu0
        %v1056 = vpop.f32.mrb[0].mxu0
        %v1057 = vadd.f32 0.0, %v1056
        %v1058 = vpop.f32.mrb[0].mxu0
        %1059 = vmatprep.mubr.bf16.mxu0 0
        %1060 = vmatmul.mubr.bf16.gmra.mrb[0].mxu0 %v926
        %v1061 = vpop.f32.mrb[0].mxu0
        %v1062 = vadd.f32 0.0, %v1061
        %v1063 = vpop.f32.mrb[0].mxu0
        %v1064 = vpop.f32.mrb[0].mxu0
        %v1065 = vadd.f32 0.0, %v1064
        %v1066 = vpop.f32.mrb[0].mxu0
        %1067 = vmatprep.mubr.bf16.mxu0 0
        %1068 = vmatmul.mubr.bf16.gmra.mrb[0].mxu0 %v927
        %v1069 = vpop.f32.mrb[0].mxu0
        %v1070 = vadd.f32 0.0, %v1069
        %v1071 = vpop.f32.mrb[0].mxu0
        %v1072 = vpop.f32.mrb[0].mxu0
        %v1073 = vadd.f32 0.0, %v1072
        %v1074 = vpop.f32.mrb[0].mxu0
        %1075 = vmatprep.mubr.bf16.mxu0 0
        %1076 = vmatmul.mubr.bf16.gmra.mrb[0].mxu0 %v928
        %v1077 = vpop.f32.mrb[0].mxu0
        %v1078 = vadd.f32 0.0, %v1077
        %v1079 = vpop.f32.mrb[0].mxu0
        %v1080 = vpop.f32.mrb[0].mxu0
        %v1081 = vadd.f32 0.0, %v1080
        %v1082 = vpop.f32.mrb[0].mxu0
        %1083 = vmatprep.mubr.bf16.mxu0 0
        %1084 = vmatmul.mubr.bf16.gmra.mrb[0].mxu0 %v929
        %v1085 = vpop.f32.mrb[0].mxu0
        %v1086 = vadd.f32 0.0, %v1085
        %v1087 = vpop.f32.mrb[0].mxu0
        %v1088 = vpop.f32.mrb[0].mxu0
        %v1089 = vadd.f32 0.0, %v1088
        %v1090 = vpop.f32.mrb[0].mxu0
        %1091 = vmatprep.mubr.bf16.mxu0 0
        %1092 = vmatmul.mubr.bf16.gmra.mrb[0].mxu0 %v930
        %v1093 = vpop.f32.mrb[0].mxu0
        %v1094 = vadd.f32 0.0, %v1093
        %v1095 = vpop.f32.mrb[0].mxu0
        %v1096 = vpop.f32.mrb[0].mxu0
        %v1097 = vadd.f32 0.0, %v1096
        %v1098 = vpop.f32.mrb[0].mxu0
        %1099 = vmatprep.mubr.bf16.mxu0 0
        %1100 = vmatmul.mubr.bf16.gmra.mrb[0].mxu0 %v931
        %v1101 = vpop.f32.mrb[0].mxu0
        %v1102 = vadd.f32 0.0, %v1101
        %v1103 = vpop.f32.mrb[0].mxu0
        %v1104 = vpop.f32.mrb[0].mxu0
        %v1105 = vadd.f32 0.0, %v1104
        %v1106 = vpop.f32.mrb[0].mxu0
        %1107 = vmatprep.mubr.bf16.mxu0 0
        %1108 = vmatmul.mubr.bf16.gmra.mrb[0].mxu0 %v932
        %v1109 = vpop.f32.mrb[0].mxu0
        %v1110 = vadd.f32 0.0, %v1109
        %v1111 = vpop.f32.mrb[0].mxu0
        %v1112 = vpop.f32.mrb[0].mxu0
        %v1113 = vadd.f32 0.0, %v1112
        %v1114 = vpop.f32.mrb[0].mxu0
        %1115 = vmatprep.mubr.bf16.mxu0 0
        %1116 = vmatmul.mubr.bf16.gmra.mrb[0].mxu0 %v933
        %v1117 = vpop.f32.mrb[0].mxu0
        %v1118 = vadd.f32 0.0, %v1117
        %v1119 = vpop.f32.mrb[0].mxu0
        %v1120 = vpop.f32.mrb[0].mxu0
        %v1121 = vadd.f32 0.0, %v1120
        %v1122 = vpop.f32.mrb[0].mxu0
        %1123 = vmatprep.mubr.bf16.mxu0 0
        %1124 = vmatmul.mubr.bf16.gmra.mrb[0].mxu0 %v934
        %v1125 = vpop.f32.mrb[0].mxu0
        %v1126 = vadd.f32 0.0, %v1125
        %v1127 = vpop.f32.mrb[0].mxu0
        %v1128 = vpop.f32.mrb[0].mxu0
        %v1129 = vadd.f32 0.0, %v1128
        %v1130 = vpop.f32.mrb[0].mxu0
        %1131 = vmatprep.mubr.bf16.mxu0 0
        %1132 = vmatmul.mubr.bf16.gmra.mrb[0].mxu0 %v935
        %v1133 = vpop.f32.mrb[0].mxu0
        %v1134 = vadd.f32 0.0, %v1133
        %v1135 = vpop.f32.mrb[0].mxu0
        %v1136 = vpop.f32.mrb[0].mxu0
        %v1137 = vadd.f32 0.0, %v1136
        %v1138 = vpop.f32.mrb[0].mxu0
        %1139 = vmatprep.mubr.bf16.mxu0 0
        %1140 = vmatmul.mubr.bf16.gmra.mrb[0].mxu0 %v936
        %v1141 = vpop.f32.mrb[0].mxu0
        %v1142 = vadd.f32 0.0, %v1141
        %v1143 = vpop.f32.mrb[0].mxu0
        %v1144 = vpop.f32.mrb[0].mxu0
        %v1145 = vadd.f32 0.0, %v1144
        %v1146 = vpop.f32.mrb[0].mxu0
        %1147 = vmatprep.mubr.bf16.mxu0 0
        %1148 = vmatmul.mubr.bf16.gmra.mrb[0].mxu0 %v937
        %v1149 = vpop.f32.mrb[0].mxu0
        %v1150 = vadd.f32 0.0, %v1149
        %v1151 = vpop.f32.mrb[0].mxu0
        %v1152 = vpop.f32.mrb[0].mxu0
        %v1153 = vadd.f32 0.0, %v1152
        %v1154 = vpop.f32.mrb[0].mxu0
        %1155 = vmatprep.mubr.bf16.mxu0 0
        %1156 = vmatmul.mubr.bf16.gmra.mrb[0].mxu0 %v938
        %v1157 = vpop.f32.mrb[0].mxu0
        %v1158 = vadd.f32 0.0, %v1157
        %v1159 = vpop.f32.mrb[0].mxu0
        %v1160 = vpop.f32.mrb[0].mxu0
        %v1161 = vadd.f32 0.0, %v1160
        %v1162 = vpop.f32.mrb[0].mxu0
        %1163 = vdwg.mxu0
        %v1164 = vunpack.c.l.bf16 %v275
        %v1165 = vunpack.c.l.bf16 %v276
        %v1166 = vunpack.c.l.bf16 %v277
        %v1167 = vunpack.c.l.bf16 %v278
        %v1168 = vunpack.c.l.bf16 %v279
        %v1169 = vunpack.c.l.bf16 %v280
        %v1170 = vunpack.c.l.bf16 %v281
        %v1171 = vunpack.c.l.bf16 %v282
        %v1172 = vunpack.c.l.bf16 %v283
        %v1173 = vunpack.c.l.bf16 %v284
        %v1174 = vunpack.c.l.bf16 %v285
        %v1175 = vunpack.c.l.bf16 %v286
        %v1176 = vunpack.c.l.bf16 %v287
        %v1177 = vunpack.c.l.bf16 %v288
        %v1178 = vunpack.c.l.bf16 %v289
        %v1179 = vunpack.c.l.bf16 %v290
        %v1180 = vunpack.c.l.bf16 %v291
        %v1181 = vunpack.c.l.bf16 %v292
        %v1182 = vunpack.c.l.bf16 %v293
        %v1183 = vunpack.c.l.bf16 %v294
        %v1184 = vunpack.c.l.bf16 %v295
        %v1185 = vunpack.c.l.bf16 %v296
        %v1186 = vunpack.c.l.bf16 %v297
        %v1187 = vunpack.c.l.bf16 %v298
        %v1188 = vunpack.c.l.bf16 %v299
        %v1189 = vunpack.c.l.bf16 %v300
        %v1190 = vunpack.c.l.bf16 %v301
        %v1191 = vunpack.c.l.bf16 %v302
        %v1192 = vunpack.c.l.bf16 %v303
        %v1193 = vunpack.c.l.bf16 %v304
        %v1194 = vunpack.c.l.bf16 %v305
        %v1195 = vunpack.c.l.bf16 %v306
        %v1196 = vadd.f32 %v1164, %v1038
        %v1197 = vadd.f32 %v1165, %v1041
        %v1198 = vadd.f32 %v1166, %v1046
        %v1199 = vadd.f32 %v1167, %v1049
        %v1200 = vadd.f32 %v1168, %v1054
        %v1201 = vadd.f32 %v1169, %v1057
        %v1202 = vadd.f32 %v1170, %v1062
        %v1203 = vadd.f32 %v1171, %v1065
        %v1204 = vadd.f32 %v1172, %v1070
        %v1205 = vadd.f32 %v1173, %v1073
        %v1206 = vadd.f32 %v1174, %v1078
        %v1207 = vadd.f32 %v1175, %v1081
        %v1208 = vadd.f32 %v1176, %v1086
        %v1209 = vadd.f32 %v1177, %v1089
        %v1210 = vadd.f32 %v1178, %v1094
        %v1211 = vadd.f32 %v1179, %v1097
        %v1212 = vadd.f32 %v1180, %v1102
        %v1213 = vadd.f32 %v1181, %v1105
        %v1214 = vadd.f32 %v1182, %v1110
        %v1215 = vadd.f32 %v1183, %v1113
        %v1216 = vadd.f32 %v1184, %v1118
        %v1217 = vadd.f32 %v1185, %v1121
        %v1218 = vadd.f32 %v1186, %v1126
        %v1219 = vadd.f32 %v1187, %v1129
        %v1220 = vadd.f32 %v1188, %v1134
        %v1221 = vadd.f32 %v1189, %v1137
        %v1222 = vadd.f32 %v1190, %v1142
        %v1223 = vadd.f32 %v1191, %v1145
        %v1224 = vadd.f32 %v1192, %v1150
        %v1225 = vadd.f32 %v1193, %v1153
        %v1226 = vadd.f32 %v1194, %v1158
        %v1227 = vadd.f32 %v1195, %v1161
        %v1228 = vld [vmem:[%s4] sm:$0x1]
        %v1230 = vlaneseq
        %v1231 = vshrl.u32 %v1230, 7
        %v1232 = vsub.s32 0, %v1231
        %v1233 = vrot.slane %v1228, %v1232
        %v1235 = vadd.f32 %v1196, %v1233
        %v1236 = vadd.f32 %v1197, %v1233
        %v1237 = vadd.f32 %v1198, %v1233
        %v1238 = vadd.f32 %v1199, %v1233
        %v1239 = vadd.f32 %v1200, %v1233
        %v1240 = vadd.f32 %v1201, %v1233
        %v1241 = vadd.f32 %v1202, %v1233
        %v1242 = vadd.f32 %v1203, %v1233
        %v1243 = vadd.f32 %v1204, %v1233
        %v1244 = vadd.f32 %v1205, %v1233
        %v1245 = vadd.f32 %v1206, %v1233
        %v1246 = vadd.f32 %v1207, %v1233
        %v1247 = vadd.f32 %v1208, %v1233
        %v1248 = vadd.f32 %v1209, %v1233
        %v1249 = vadd.f32 %v1210, %v1233
        %v1250 = vadd.f32 %v1211, %v1233
        %v1251 = vadd.f32 %v1212, %v1233
        %v1252 = vadd.f32 %v1213, %v1233
        %v1253 = vadd.f32 %v1214, %v1233
        %v1254 = vadd.f32 %v1215, %v1233
        %v1255 = vadd.f32 %v1216, %v1233
        %v1256 = vadd.f32 %v1217, %v1233
        %v1257 = vadd.f32 %v1218, %v1233
        %v1258 = vadd.f32 %v1219, %v1233
        %v1259 = vadd.f32 %v1220, %v1233
        %v1260 = vadd.f32 %v1221, %v1233
        %v1261 = vadd.f32 %v1222, %v1233
        %v1262 = vadd.f32 %v1223, %v1233
        %v1263 = vadd.f32 %v1224, %v1233
        %v1264 = vadd.f32 %v1225, %v1233
        %v1265 = vadd.f32 %v1226, %v1233
        %v1266 = vadd.f32 %v1227, %v1233
        %1267 = vst [vmem:[%s271] sm:$0xff] %v1235
        %1268 = vst [vmem:[%s271 + $0x8] sm:$0xff] %v1236
        %1269 = vst [vmem:[%s271 + $0x10] sm:$0xff] %v1237
        %1270 = vst [vmem:[%s271 + $0x18] sm:$0xff] %v1238
        %1271 = vst [vmem:[%s271 + $0x20] sm:$0xff] %v1239
        %1272 = vst [vmem:[%s271 + $0x28] sm:$0xff] %v1240
        %1273 = vst [vmem:[%s271 + $0x30] sm:$0xff] %v1241
        %1274 = vst [vmem:[%s271 + $0x38] sm:$0xff] %v1242
        %1275 = vst [vmem:[%s271 + $0x40] sm:$0xff] %v1243
        %1276 = vst [vmem:[%s271 + $0x48] sm:$0xff] %v1244
        %1277 = vst [vmem:[%s271 + $0x50] sm:$0xff] %v1245
        %1278 = vst [vmem:[%s271 + $0x58] sm:$0xff] %v1246
        %1279 = vst [vmem:[%s271 + $0x60] sm:$0xff] %v1247
        %1280 = vst [vmem:[%s271 + $0x68] sm:$0xff] %v1248
        %1281 = vst [vmem:[%s271 + $0x70] sm:$0xff] %v1249
        %1282 = vst [vmem:[%s271 + $0x78] sm:$0xff] %v1250
        %1283 = vst [vmem:[%s271 + $0x80] sm:$0xff] %v1251
        %1284 = vst [vmem:[%s271 + $0x88] sm:$0xff] %v1252
        %1285 = vst [vmem:[%s271 + $0x90] sm:$0xff] %v1253
        %1286 = vst [vmem:[%s271 + $0x98] sm:$0xff] %v1254
        %1287 = vst [vmem:[%s271 + $0xa0] sm:$0xff] %v1255
        %1288 = vst [vmem:[%s271 + $0xa8] sm:$0xff] %v1256
        %1289 = vst [vmem:[%s271 + $0xb0] sm:$0xff] %v1257
        %1290 = vst [vmem:[%s271 + $0xb8] sm:$0xff] %v1258
        %1291 = vst [vmem:[%s271 + $0xc0] sm:$0xff] %v1259
        %1292 = vst [vmem:[%s271 + $0xc8] sm:$0xff] %v1260
        %1293 = vst [vmem:[%s271 + $0xd0] sm:$0xff] %v1261
        %1294 = vst [vmem:[%s271 + $0xd8] sm:$0xff] %v1262
        %1295 = vst [vmem:[%s271 + $0xe0] sm:$0xff] %v1263
        %1296 = vst [vmem:[%s271 + $0xe8] sm:$0xff] %v1264
        %1297 = vst [vmem:[%s271 + $0xf0] sm:$0xff] %v1265
        %1298 = vst [vmem:[%s271 + $0xf8] sm:$0xff] %v1266
        %s1299 = sand.u32 %s141, 1
        %s1300 = scalar_lea.sflag [#allocation4], %s1299
        %s1301 = sand.u32 %s141, 1
        %s1302 = smul.addr %s1301, 256
        %s1303 = scalar_lea.vmem [#allocation8], %s1302
        // Predicated region
        $region53: #{tpu_custom_call.1} parent=39 // pred_check
          %p1304 = pneg %p151
        $region54: #{tpu_custom_call.1} parent=39 // pred_check_branch
          %1306 = sbr.rel (%p1304) target = $region56
        $region55: #{tpu_custom_call.1} parent=39 // pred_region
          %s1307 = smul.u32 32, %s23
          %s1309 = ssub.s32 4096, 4096
          %1310 = vsyncadd %s1300, %s1309
          %s1311 = smul.addr %s1307, 128
          %s1312 = scalar_lea.hbm %s5, %s1311
          %s1313 = sshll.u32 %s1303, 4
          %s1314 = int_to_ptr.vmem [resolvable:$true] %s1313
          %1319 = dma.vmem_to_hbm [thread:$0]  %s1314, 4096, %s1312, %s1300, 128, 128, 8
        $region56: #{tpu_custom_call.1} parent=39 // pred_fallthru
          _
      $region40: #{tpu_custom_call.1} parent=5 // pred_fallthru
        _
      %p1320 = scmp.le.s32.totalorder 2, %s18
      // Predicated region
      $region57: #{tpu_custom_call.1} parent=5 // pred_check
        %p1321 = pneg %p1320
      $region58: #{tpu_custom_call.1} parent=5 // pred_check_branch
        %1323 = sbr.rel (%p1321) target = $region60
      $region59: #{tpu_custom_call.1} parent=5 // pred_region
        %s1324 = ssub.s32 %s18, 2
        // Predicated region
        $region61: #{tpu_custom_call.1} parent=59 // pred_check
          %p1325 = pneg %p157
        $region62: #{tpu_custom_call.1} parent=59 // pred_check_branch
          %1327 = sbr.rel (%p1325) target = $region64
        $region63: #{tpu_custom_call.1} parent=59 // pred_region
          %s1328 = sand.u32 %s142, 1
          %s1329 = scalar_lea.sflag [#allocation4], %s1328
          %s1330 = sand.u32 %s142, 1
          %s1331 = smul.addr %s1330, 256
          %s1332 = scalar_lea.vmem [#allocation8], %s1331
          %1333 = dma.done %s1329, 4096
        $region64: #{tpu_custom_call.1} parent=59 // pred_fallthru
          _
      $region60: #{tpu_custom_call.1} parent=5 // pred_fallthru
        _
    $region6: #{tpu_custom_call.1} parent=1 // loop_footer
      %s22 = sadd.s32 1, %s18
    $region7: #{tpu_custom_call.1} parent=1 // loop_footer_branch
      %17 = sbr.rel target = $region3
    $region8: #{tpu_custom_call.1} parent=1 // loop_exit
      _
    %1334 = vsyncpa [#allocation3], 1
    %s1335 = scalar_lea.sflag [#allocation3], 1
    %1336 = vsyncpa %s1335, 1
    %1337 = vsyncpa [#allocation6], 1
    %1338 = vsyncpa [#allocation4], 1
    %s1339 = scalar_lea.sflag [#allocation4], 1
    %1340 = vsyncpa %s1339, 1

// kernel: tpu_custom_call.1
$region0: #{tpu_custom_call.1}
  #allocation0 [shape = 'u32[]', space=smem, size = 0x4, offset = 0x4, fixed_abs, tag = 'smem constant byte address 0x4 - core index']
  #allocation1 [shape = 'u32[144,128]{1,0:T(1,128)}', space=vmem, size = 0x12000, scoped, tag = 'internal scratch']
  %s0 = inlined_call_operand.hbm [shape: bf16[512,128], index: 0, kind: input, shape index: {}]
  %s1 = inlined_call_operand.hbm [shape: bf16[128,128], index: 1, kind: input, shape index: {}]
  %s2 = inlined_call_operand.vmem [shape: f32[1,128], index: 2, kind: input, shape index: {}]
  %s3 = inlined_call_operand.hbm [shape: bf16[128,128], index: 3, kind: input, shape index: {}]
  %s4 = inlined_call_operand.vmem [shape: f32[1,128], index: 4, kind: input, shape index: {}]
  %s5 = inlined_call_operand.hbm [shape: f32[512,128], index: 5, kind: output, shape index: {}]
  %s6 = sld [smem:[#allocation0]]
  $region65: #{tpu_custom_call.1} parent=0
    _
  %s8 = ssub.s32 1, %s6
  %s9 = scalar_select 0, %s8, %s6
  $region1: #{tpu_custom_call.1} parent=0
    #allocation2 [shape = 'u8[131072]{0}', space=vmem, size = 0x20000, scoped, tag = 'input window, operand 0']
    #allocation3 [shape = 's32[2]{0}', space=sflag, size = 0x8, scoped, tag = 'scoped memory for tpu_custom_call.1']
    #allocation4 [shape = 's32[2]{0}', space=sflag, size = 0x8, scoped, tag = 'scoped memory for tpu_custom_call.1']
    #allocation5 [shape = 'u8[32768]{0}', space=vmem, size = 0x8000, scoped, tag = 'input window, operand 1, single buffered']
    #allocation6 [shape = 's32[1]{0}', space=sflag, size = 0x4, scoped, tag = 'scoped memory for tpu_custom_call.1']
    #allocation7 [shape = 'u8[32768]{0}', space=vmem, size = 0x8000, scoped, tag = 'input window, operand 3, single buffered']
    #allocation8 [shape = 'u8[262144]{0}', space=vmem, size = 0x40000, scoped, tag = 'output window, operand 0']
    %10 = vsyncpa [#allocation3], 0
    %s11 = scalar_lea.sflag [#allocation3], 1
    %12 = vsyncpa %s11, 0
    %13 = vsyncpa [#allocation6], 0
    %14 = vsyncpa [#allocation4], 0
    %s15 = scalar_lea.sflag [#allocation4], 1
    %16 = vsyncpa %s15, 0
    loop: start=0, step=1, limit=4
    $region2: #{tpu_custom_call.1} parent=1 // loop_pre_header
      _
    $region3: #{tpu_custom_call.1} parent=1 // loop_header
      %s18 = sphi 0, %s22
      %p19 = scmp.ge.s32.totalorder %s18, 4
      %s28 = sphi 0, %s30
      %s31 = sphi 0, %s28
      %s32 = sphi 0, %s31
      %s48 = sphi 0, %s32
      %s52 = sphi 0, %s52
      %s54 = sphi 0, %s52
      %s55 = sphi 0, %s54
      %s69 = sphi 0, %s55
      %s73 = sphi 0, %s73
      %s75 = sphi 0, %s73
      %s76 = sphi 0, %s75
      %s90 = sphi 0, %s76
      %s94 = sphi 0, %s94
      %s96 = sphi 0, %s94
      %s97 = sphi 0, %s96
      %s111 = sphi 0, %s97
      %s115 = sphi 0, %s115
      %s117 = sphi 0, %s115
      %s118 = sphi 0, %s117
      %s132 = sphi 0, %s118
      %s138 = sphi 0, %s140
      %s141 = sphi 0, %s138
      %s142 = sphi 0, %s141
      %s158 = sphi 0, %s142
    $region4: #{tpu_custom_call.1} parent=1 // loop_header_branch
      %21 = sbr.rel (%p19) target = $region8
    $region5: #{tpu_custom_call.1} parent=1 // loop_body
      %s23 = ssub.s32 %s18, 1
      %s24 = ssub.s32 %s18, 2
      %s25 = sadd.s32 %s18, 1
      %s26 = ssub.s32 %s18, %s25
      %p27 = scmp.eq.s32.totalorder %s26, 0
      %s29 = sadd.s32 %s28, 1
      %s30 = scalar_select %p27, %s28, %s29
      %p33 = pneg %p27
      %p34 = scmp.eq.s32.totalorder %s18, 1
      %p35 = por %p33, %p34
      %p36 = scmp.ne.s32.totalorder %s28, %s31
      %p37 = scmp.eq.s32.totalorder %s18, 0
      %p38 = por %p36, %p37
      %p39 = scmp.ne.s32.totalorder %s28, %s31
      %p40 = scmp.eq.s32.totalorder %s23, 1
      %p41 = por %p39, %p40
      %p42 = scmp.ne.s32.totalorder %s31, %s32
      %p43 = scmp.eq.s32.totalorder %s23, 0
      %p44 = por %p42, %p43
      %p45 = scmp.ne.s32.totalorder %s31, %s32
      %p46 = scmp.eq.s32.totalorder %s24, 1
      %p47 = por %p45, %p46
      %p49 = scmp.ne.s32.totalorder %s32, %s48
      %p50 = scmp.eq.s32.totalorder %s24, 0
      %p51 = por %p49, %p50
      %s53 = sadd.s32 %s52, 1
      %p56 = scmp.eq.s32.totalorder %s18, 1
      %p57 = scmp.ne.s32.totalorder %s52, %s54
      %p58 = scmp.eq.s32.totalorder %s18, 0
      %p59 = por %p57, %p58
      %p60 = scmp.ne.s32.totalorder %s52, %s54
      %p61 = scmp.eq.s32.totalorder %s23, 1
      %p62 = por %p60, %p61
      %p63 = scmp.ne.s32.totalorder %s54, %s55
      %p64 = scmp.eq.s32.totalorder %s23, 0
      %p65 = por %p63, %p64
      %p66 = scmp.ne.s32.totalorder %s54, %s55
      %p67 = scmp.eq.s32.totalorder %s24, 1
      %p68 = por %p66, %p67
      %p70 = scmp.ne.s32.totalorder %s55, %s69
      %p71 = scmp.eq.s32.totalorder %s24, 0
      %p72 = por %p70, %p71
      %s74 = sadd.s32 %s73, 1
      %p77 = scmp.eq.s32.totalorder %s18, 1
      %p78 = scmp.ne.s32.totalorder %s73, %s75
      %p79 = scmp.eq.s32.totalorder %s18, 0
      %p80 = por %p78, %p79
      %p81 = scmp.ne.s32.totalorder %s73, %s75
      %p82 = scmp.eq.s32.totalorder %s23, 1
      %p83 = por %p81, %p82
      %p84 = scmp.ne.s32.totalorder %s75, %s76
      %p85 = scmp.eq.s32.totalorder %s23, 0
      %p86 = por %p84, %p85
      %p87 = scmp.ne.s32.totalorder %s75, %s76
      %p88 = scmp.eq.s32.totalorder %s24, 1
      %p89 = por %p87, %p88
      %p91 = scmp.ne.s32.totalorder %s76, %s90
      %p92 = scmp.eq.s32.totalorder %s24, 0
      %p93 = por %p91, %p92
      %s95 = sadd.s32 %s94, 1
      %p98 = scmp.eq.s32.totalorder %s18, 1
      %p99 = scmp.ne.s32.totalorder %s94, %s96
      %p100 = scmp.eq.s32.totalorder %s18, 0
      %p101 = por %p99, %p100
      %p102 = scmp.ne.s32.totalorder %s94, %s96
      %p103 = scmp.eq.s32.totalorder %s23, 1
      %p104 = por %p102, %p103
      %p105 = scmp.ne.s32.totalorder %s96, %s97
      %p106 = scmp.eq.s32.totalorder %s23, 0
      %p107 = por %p105, %p106
      %p108 = scmp.ne.s32.totalorder %s96, %s97
      %p109 = scmp.eq.s32.totalorder %s24, 1
      %p110 = por %p108, %p109
      %p112 = scmp.ne.s32.totalorder %s97, %s111
      %p113 = scmp.eq.s32.totalorder %s24, 0
      %p114 = por %p112, %p113
      %s116 = sadd.s32 %s115, 1
      %p119 = scmp.eq.s32.totalorder %s18, 1
      %p120 = scmp.ne.s32.totalorder %s115, %s117
      %p121 = scmp.eq.s32.totalorder %s18, 0
      %p122 = por %p120, %p121
      %p123 = scmp.ne.s32.totalorder %s115, %s117
      %p124 = scmp.eq.s32.totalorder %s23, 1
      %p125 = por %p123, %p124
      %p126 = scmp.ne.s32.totalorder %s117, %s118
      %p127 = scmp.eq.s32.totalorder %s23, 0
      %p128 = por %p126, %p127
      %p129 = scmp.ne.s32.totalorder %s117, %s118
      %p130 = scmp.eq.s32.totalorder %s24, 1
      %p131 = por %p129, %p130
      %p133 = scmp.ne.s32.totalorder %s118, %s132
      %p134 = scmp.eq.s32.totalorder %s24, 0
      %p135 = por %p133, %p134
      %s136 = ssub.s32 %s18, %s25
      %p137 = scmp.eq.s32.totalorder %s136, 0
      %s139 = sadd.s32 %s138, 1
      %s140 = scalar_select %p137, %s138, %s139
      %p143 = pneg %p137
      %p144 = scmp.eq.s32.totalorder %s18, 1
      %p145 = por %p143, %p144
      %p146 = scmp.ne.s32.totalorder %s138, %s141
      %p147 = scmp.eq.s32.totalorder %s18, 0
      %p148 = por %p146, %p147
      %p149 = scmp.ne.s32.totalorder %s138, %s141
      %p150 = scmp.eq.s32.totalorder %s23, 1
      %p151 = por %p149, %p150
      %p152 = scmp.ne.s32.totalorder %s141, %s142
      %p153 = scmp.eq.s32.totalorder %s23, 0
      %p154 = por %p152, %p153
      %p155 = scmp.ne.s32.totalorder %s141, %s142
      %p156 = scmp.eq.s32.totalorder %s24, 1
      %p157 = por %p155, %p156
      %p159 = scmp.ne.s32.totalorder %s142, %s158
      %p160 = scmp.eq.s32.totalorder %s24, 0
      %p161 = por %p159, %p160
      %p162 = scmp.le.s32.totalorder 1, %s18
      %p163 = scmp.lt.s32.totalorder %s18, 3
      %p164 = pnand %p162, %p163
      %p165 = pneg %p164
      // Predicated region
      $region9: #{tpu_custom_call.1} parent=5 // pred_check
        _
      $region10: #{tpu_custom_call.1} parent=5 // pred_check_branch
        %167 = sbr.rel (%p164) target = $region12
      $region11: #{tpu_custom_call.1} parent=5 // pred_region
        %s168 = ssub.s32 %s18, 1
        // Predicated region
        $region13: #{tpu_custom_call.1} parent=11 // pred_check
          %p169 = pneg %p65
        $region14: #{tpu_custom_call.1} parent=11 // pred_check_branch
          %171 = sbr.rel (%p169) target = $region16
        $region15: #{tpu_custom_call.1} parent=11 // pred_region
          %s173 = ssub.s32 1024, 1024
          %174 = vsyncadd [#allocation6], %s173
          %s175 = sshll.u32 [#allocation5], 4
          %s176 = int_to_ptr.vmem [resolvable:$true] %s175
          %181 = dma.hbm_to_vmem [thread:$0]  %s1, 1024, %s176, [#allocation6], 64, 64, 4
        $region16: #{tpu_custom_call.1} parent=11 // pred_fallthru
          _
        // Predicated region
        $region17: #{tpu_custom_call.1} parent=11 // pred_check
          %p182 = pneg %p86
        $region18: #{tpu_custom_call.1} parent=11 // pred_check_branch
          %184 = sbr.rel (%p182) target = $region20
        $region19: #{tpu_custom_call.1} parent=11 // pred_region
          _
        $region20: #{tpu_custom_call.1} parent=11 // pred_fallthru
          _
        // Predicated region
        $region21: #{tpu_custom_call.1} parent=11 // pred_check
          %p185 = pneg %p107
        $region22: #{tpu_custom_call.1} parent=11 // pred_check_branch
          %187 = sbr.rel (%p185) target = $region24
        $region23: #{tpu_custom_call.1} parent=11 // pred_region
          %s189 = ssub.s32 1024, 1024
          %190 = vsyncadd [#allocation6], %s189
          %s191 = sshll.u32 [#allocation7], 4
          %s192 = int_to_ptr.vmem [resolvable:$true] %s191
          %197 = dma.hbm_to_vmem [thread:$0]  %s3, 1024, %s192, [#allocation6], 64, 64, 4
        $region24: #{tpu_custom_call.1} parent=11 // pred_fallthru
          _
        // Predicated region
        $region25: #{tpu_custom_call.1} parent=11 // pred_check
          %p198 = pneg %p128
        $region26: #{tpu_custom_call.1} parent=11 // pred_check_branch
          %200 = sbr.rel (%p198) target = $region28
        $region27: #{tpu_custom_call.1} parent=11 // pred_region
          _
        $region28: #{tpu_custom_call.1} parent=11 // pred_fallthru
          _
      $region12: #{tpu_custom_call.1} parent=5 // pred_fallthru
        _
      %p201 = scmp.lt.s32.totalorder %s18, 2
      // Predicated region
      $region29: #{tpu_custom_call.1} parent=5 // pred_check
        %p202 = pneg %p201
      $region30: #{tpu_custom_call.1} parent=5 // pred_check_branch
        %204 = sbr.rel (%p202) target = $region32
      $region31: #{tpu_custom_call.1} parent=5 // pred_region
        // Predicated region
        $region33: #{tpu_custom_call.1} parent=31 // pred_check
          %p205 = pneg %p38
        $region34: #{tpu_custom_call.1} parent=31 // pred_check_branch
          %207 = sbr.rel (%p205) target = $region36
        $region35: #{tpu_custom_call.1} parent=31 // pred_region
          %s208 = sand.u32 %s28, 1
          %s209 = scalar_lea.sflag [#allocation3], %s208
          %s210 = sand.u32 %s28, 1
          %s211 = smul.addr %s210, 128
          %s212 = scalar_lea.vmem [#allocation2], %s211
          %s213 = smul.u32 32, %s18
          %s215 = ssub.s32 2048, 2048
          %216 = vsyncadd %s209, %s215
          %s217 = smul.addr %s213, 64
          %s218 = scalar_lea.hbm %s0, %s217
          %s219 = sshll.u32 %s212, 4
          %s220 = int_to_ptr.vmem [resolvable:$true] %s219
          %225 = dma.hbm_to_vmem [thread:$0]  %s218, 2048, %s220, %s209, 64, 64, 4
        $region36: #{tpu_custom_call.1} parent=31 // pred_fallthru
          _
      $region32: #{tpu_custom_call.1} parent=5 // pred_fallthru
        _
      %p226 = scmp.le.s32.totalorder 1, %s18
      %p227 = scmp.lt.s32.totalorder %s18, 3
      %p228 = pnand %p226, %p227
      %p229 = pneg %p228
      // Predicated region
      $region37: #{tpu_custom_call.1} parent=5 // pred_check
        _
      $region38: #{tpu_custom_call.1} parent=5 // pred_check_branch
        %231 = sbr.rel (%p228) target = $region40
      $region39: #{tpu_custom_call.1} parent=5 // pred_region
        %s232 = ssub.s32 %s18, 1
        %s233 = sand.u32 %s31, 1
        %s234 = scalar_lea.sflag [#allocation3], %s233
        %s235 = sand.u32 %s31, 1
        %s236 = smul.addr %s235, 128
        %s237 = scalar_lea.vmem [#allocation2], %s236
        // Predicated region
        $region41: #{tpu_custom_call.1} parent=39 // pred_check
          %p238 = pneg %p44
        $region42: #{tpu_custom_call.1} parent=39 // pred_check_branch
          %240 = sbr.rel (%p238) target = $region44
        $region43: #{tpu_custom_call.1} parent=39 // pred_region
          %241 = dma.done %s234, 2048
        $region44: #{tpu_custom_call.1} parent=39 // pred_fallthru
          _
        // Predicated region
        $region45: #{tpu_custom_call.1} parent=39 // pred_check
          %p242 = pneg %p65
        $region46: #{tpu_custom_call.1} parent=39 // pred_check_branch
          %244 = sbr.rel (%p242) target = $region48
        $region47: #{tpu_custom_call.1} parent=39 // pred_region
          %245 = dma.done [#allocation6], 1024
        $region48: #{tpu_custom_call.1} parent=39 // pred_fallthru
          _
        // Predicated region
        $region49: #{tpu_custom_call.1} parent=39 // pred_check
          %p246 = pneg %p107
        $region50: #{tpu_custom_call.1} parent=39 // pred_check_branch
          %248 = sbr.rel (%p246) target = $region52
        $region51: #{tpu_custom_call.1} parent=39 // pred_region
          %249 = dma.done [#allocation6], 1024
        $region52: #{tpu_custom_call.1} parent=39 // pred_fallthru
          _
        %s250 = sand.u32 %s31, 1
        %s251 = scalar_lea.sflag [#allocation3], %s250
        %s252 = sand.u32 %s31, 1
        %s253 = smul.addr %s252, 128
        %s254 = scalar_lea.vmem [#allocation2], %s253
        %p255 = pneg %p44
        %p256 = pneg %p41
        %p257 = pneg %p65
        %p258 = pneg %p62
        %p259 = pneg %p86
        %p260 = pneg %p83
        %p261 = pneg %p107
        %p262 = pneg %p104
        %p263 = pneg %p128
        %p264 = pneg %p125
        %p265 = pneg %p154
        %p266 = pneg %p151
        %s267 = sand.u32 %s141, 1
        %s268 = scalar_lea.sflag [#allocation4], %s267
        %s269 = sand.u32 %s141, 1
        %s270 = smul.addr %s269, 256
        %s271 = scalar_lea.vmem [#allocation8], %s270
        %s272 = smul.u32 32, %s23
        %s273 = smul.u32 32, %s23
        %v275 = vld [vmem:[%s237] sm:$0xf]
        %v276 = vld [vmem:[%s237 + $0x4] sm:$0xf]
        %v277 = vld [vmem:[%s237 + $0x8] sm:$0xf]
        %v278 = vld [vmem:[%s237 + $0xc] sm:$0xf]
        %v279 = vld [vmem:[%s237 + $0x10] sm:$0xf]
        %v280 = vld [vmem:[%s237 + $0x14] sm:$0xf]
        %v281 = vld [vmem:[%s237 + $0x18] sm:$0xf]
        %v282 = vld [vmem:[%s237 + $0x1c] sm:$0xf]
        %v283 = vld [vmem:[%s237 + $0x20] sm:$0xf]
        %v284 = vld [vmem:[%s237 + $0x24] sm:$0xf]
        %v285 = vld [vmem:[%s237 + $0x28] sm:$0xf]
        %v286 = vld [vmem:[%s237 + $0x2c] sm:$0xf]
        %v287 = vld [vmem:[%s237 + $0x30] sm:$0xf]
        %v288 = vld [vmem:[%s237 + $0x34] sm:$0xf]
        %v289 = vld [vmem:[%s237 + $0x38] sm:$0xf]
        %v290 = vld [vmem:[%s237 + $0x3c] sm:$0xf]
        %v291 = vld [vmem:[%s237 + $0x40] sm:$0xf]
        %v292 = vld [vmem:[%s237 + $0x44] sm:$0xf]
        %v293 = vld [vmem:[%s237 + $0x48] sm:$0xf]
        %v294 = vld [vmem:[%s237 + $0x4c] sm:$0xf]
        %v295 = vld [vmem:[%s237 + $0x50] sm:$0xf]
        %v296 = vld [vmem:[%s237 + $0x54] sm:$0xf]
        %v297 = vld [vmem:[%s237 + $0x58] sm:$0xf]
        %v298 = vld [vmem:[%s237 + $0x5c] sm:$0xf]
        %v299 = vld [vmem:[%s237 + $0x60] sm:$0xf]
        %v300 = vld [vmem:[%s237 + $0x64] sm:$0xf]
        %v301 = vld [vmem:[%s237 + $0x68] sm:$0xf]
        %v302 = vld [vmem:[%s237 + $0x6c] sm:$0xf]
        %v303 = vld [vmem:[%s237 + $0x70] sm:$0xf]
        %v304 = vld [vmem:[%s237 + $0x74] sm:$0xf]
        %v305 = vld [vmem:[%s237 + $0x78] sm:$0xf]
        %v306 = vld [vmem:[%s237 + $0x7c] sm:$0xf]
        %v307 = vld [vmem:[#allocation5] sm:$0xf]
        %v308 = vld [vmem:[#allocation5 + $0x4] sm:$0xf]
        %v309 = vld [vmem:[#allocation5 + $0x8] sm:$0xf]
        %v310 = vld [vmem:[#allocation5 + $0xc] sm:$0xf]
        %v311 = vld [vmem:[#allocation5 + $0x10] sm:$0xf]
        %v312 = vld [vmem:[#allocation5 + $0x14] sm:$0xf]
        %v313 = vld [vmem:[#allocation5 + $0x18] sm:$0xf]
        %v314 = vld [vmem:[#allocation5 + $0x1c] sm:$0xf]
        %v315 = vld [vmem:[#allocation5 + $0x20] sm:$0xf]
        %v316 = vld [vmem:[#allocation5 + $0x24] sm:$0xf]
        %v317 = vld [vmem:[#allocation5 + $0x28] sm:$0xf]
        %v318 = vld [vmem:[#allocation5 + $0x2c] sm:$0xf]
        %v319 = vld [vmem:[#allocation5 + $0x30] sm:$0xf]
        %v320 = vld [vmem:[#allocation5 + $0x34] sm:$0xf]
        %v321 = vld [vmem:[#allocation5 + $0x38] sm:$0xf]
        %v322 = vld [vmem:[#allocation5 + $0x3c] sm:$0xf]
        %v323 = vld [vmem:[%s2] sm:$0x1]
        %v325 = vlaneseq
        %v326 = vshrl.u32 %v325, 7
        %v327 = vsub.s32 0, %v326
        %v328 = vrot.slane %v323, %v327
        %v362 = vunpack.c.l.b16 %v275
        %v363 = vunpack.c.l.b16 %v276
        %v364 = vunpack.c.l.b16 %v277
        %v365 = vunpack.c.l.b16 %v278
        %v366 = vunpack.c.l.b16 %v279
        %v367 = vunpack.c.l.b16 %v280
        %v368 = vunpack.c.l.b16 %v281
        %v369 = vunpack.c.l.b16 %v282
        %v370 = vunpack.c.l.b16 %v283
        %v371 = vunpack.c.l.b16 %v284
        %v372 = vunpack.c.l.b16 %v285
        %v373 = vunpack.c.l.b16 %v286
        %v374 = vunpack.c.l.b16 %v287
        %v375 = vunpack.c.l.b16 %v288
        %v376 = vunpack.c.l.b16 %v289
        %v377 = vunpack.c.l.b16 %v290
        %v378 = vunpack.c.l.b16 %v291
        %v379 = vunpack.c.l.b16 %v292
        %v380 = vunpack.c.l.b16 %v293
        %v381 = vunpack.c.l.b16 %v294
        %v382 = vunpack.c.l.b16 %v295
        %v383 = vunpack.c.l.b16 %v296
        %v384 = vunpack.c.l.b16 %v297
        %v385 = vunpack.c.l.b16 %v298
        %v386 = vunpack.c.l.b16 %v299
        %v387 = vunpack.c.l.b16 %v300
        %v388 = vunpack.c.l.b16 %v301
        %v389 = vunpack.c.l.b16 %v302
        %v390 = vunpack.c.l.b16 %v303
        %v391 = vunpack.c.l.b16 %v304
        %v392 = vunpack.c.l.b16 %v305
        %v393 = vunpack.c.l.b16 %v306
        %v394 = vpack.c.b16 %v363, %v362
        %v395 = vpack.c.b16 %v365, %v364
        %v396 = vpack.c.b16 %v367, %v366
        %v397 = vpack.c.b16 %v369, %v368
        %v398 = vpack.c.b16 %v371, %v370
        %v399 = vpack.c.b16 %v373, %v372
        %v400 = vpack.c.b16 %v375, %v374
        %v401 = vpack.c.b16 %v377, %v376
        %v402 = vpack.c.b16 %v379, %v378
        %v403 = vpack.c.b16 %v381, %v380
        %v404 = vpack.c.b16 %v383, %v382
        %v405 = vpack.c.b16 %v385, %v384
        %v406 = vpack.c.b16 %v387, %v386
        %v407 = vpack.c.b16 %v389, %v388
        %v408 = vpack.c.b16 %v391, %v390
        %v409 = vpack.c.b16 %v393, %v392
        %v442 = vunpack.c.l.b16 %v307
        %v443 = vunpack.c.l.b16 %v308
        %v444 = vunpack.c.l.b16 %v309
        %v445 = vunpack.c.l.b16 %v310
        %v446 = vunpack.c.l.b16 %v311
        %v447 = vunpack.c.l.b16 %v312
        %v448 = vunpack.c.l.b16 %v313
        %v449 = vunpack.c.l.b16 %v314
        %v450 = vunpack.c.l.b16 %v315
        %v451 = vunpack.c.l.b16 %v316
        %v452 = vunpack.c.l.b16 %v317
        %v453 = vunpack.c.l.b16 %v318
        %v454 = vunpack.c.l.b16 %v319
        %v455 = vunpack.c.l.b16 %v320
        %v456 = vunpack.c.l.b16 %v321
        %v457 = vunpack.c.l.b16 %v322
        %v458 = vpack.c.b16 %v443, %v442
        %v459 = vpack.c.b16 %v445, %v444
        %v460 = vpack.c.b16 %v447, %v446
        %v461 = vpack.c.b16 %v449, %v448
        %v462 = vpack.c.b16 %v451, %v450
        %v463 = vpack.c.b16 %v453, %v452
        %v464 = vpack.c.b16 %v455, %v454
        %v465 = vpack.c.b16 %v457, %v456
        %474 = vmatprep.subr.bf16.mxu0 0
        %475 = vmatpush1.bf16.msra.mxu0 %v458
        %476 = vmatprep.subr.bf16.mxu0 0
        %477 = vmatpush1.bf16.msra.mxu0 %v459
        %478 = vmatprep.subr.bf16.mxu0 0
        %479 = vmatpush1.bf16.msra.mxu0 %v460
        %480 = vmatprep.subr.bf16.mxu0 0
        %481 = vmatpush1.bf16.msra.mxu0 %v461
        %482 = vmatprep.subr.bf16.mxu0 0
        %483 = vmatpush1.bf16.msra.mxu0 %v462
        %484 = vmatprep.subr.bf16.mxu0 0
        %485 = vmatpush1.bf16.msra.mxu0 %v463
        %486 = vmatprep.subr.bf16.mxu0 0
        %487 = vmatpush1.bf16.msra.mxu0 %v464
        %488 = vmatprep.subr.bf16.mxu0 0
        %489 = vmatpush1.bf16.msra.mxu0 %v465
        %490 = vmatprep.subr.bf16.mxu0 0
        %491 = vmatpush1.bf16.msra.mxu0 0
        %492 = vmatprep.subr.bf16.mxu0 0
        %493 = vmatpush1.bf16.msra.mxu0 0
        %494 = vmatprep.subr.bf16.mxu0 0
        %495 = vmatpush1.bf16.msra.mxu0 0
        %496 = vmatprep.subr.bf16.mxu0 0
        %497 = vmatpush1.bf16.msra.mxu0 0
        %498 = vmatprep.subr.bf16.mxu0 0
        %499 = vmatpush1.bf16.msra.mxu0 0
        %500 = vmatprep.subr.bf16.mxu0 0
        %501 = vmatpush1.bf16.msra.mxu0 0
        %502 = vmatprep.subr.bf16.mxu0 0
        %503 = vmatpush1.bf16.msra.mxu0 0
        %504 = vmatprep.subr.bf16.mxu0 0
        %505 = vmatpush1.bf16.msra.mxu0 0
        %506 = vmatprep.mubr.bf16.mxu0 0
        %507 = vmatmul.mubr.bf16.gmra.mrb[0].mxu0 %v394
        %v508 = vpop.f32.mrb[0].mxu0
        %v509 = vadd.f32 %v328, %v508
        %v510 = vpop.f32.mrb[0].mxu0
        %v511 = vpop.f32.mrb[0].mxu0
        %v512 = vadd.f32 %v328, %v511
        %v513 = vpop.f32.mrb[0].mxu0
        %514 = vmatprep.mubr.bf16.mxu0 0
        %515 = vmatmul.mubr.bf16.gmra.mrb[0].mxu0 %v395
        %v516 = vpop.f32.mrb[0].mxu0
        %v517 = vadd.f32 %v328, %v516
        %v518 = vpop.f32.mrb[0].mxu0
        %v519 = vpop.f32.mrb[0].mxu0
        %v520 = vadd.f32 %v328, %v519
        %v521 = vpop.f32.mrb[0].mxu0
        %522 = vmatprep.mubr.bf16.mxu0 0
        %523 = vmatmul.mubr.bf16.gmra.mrb[0].mxu0 %v396
        %v524 = vpop.f32.mrb[0].mxu0
        %v525 = vadd.f32 %v328, %v524
        %v526 = vpop.f32.mrb[0].mxu0
        %v527 = vpop.f32.mrb[0].mxu0
        %v528 = vadd.f32 %v328, %v527
        %v529 = vpop.f32.mrb[0].mxu0
        %530 = vmatprep.mubr.bf16.mxu0 0
        %531 = vmatmul.mubr.bf16.gmra.mrb[0].mxu0 %v397
        %v532 = vpop.f32.mrb[0].mxu0
        %v533 = vadd.f32 %v328, %v532
        %v534 = vpop.f32.mrb[0].mxu0
        %v535 = vpop.f32.mrb[0].mxu0
        %v536 = vadd.f32 %v328, %v535
        %v537 = vpop.f32.mrb[0].mxu0
        %538 = vmatprep.mubr.bf16.mxu0 0
        %539 = vmatmul.mubr.bf16.gmra.mrb[0].mxu0 %v398
        %v540 = vpop.f32.mrb[0].mxu0
        %v541 = vadd.f32 %v328, %v540
        %v542 = vpop.f32.mrb[0].mxu0
        %v543 = vpop.f32.mrb[0].mxu0
        %v544 = vadd.f32 %v328, %v543
        %v545 = vpop.f32.mrb[0].mxu0
        %546 = vmatprep.mubr.bf16.mxu0 0
        %547 = vmatmul.mubr.bf16.gmra.mrb[0].mxu0 %v399
        %v548 = vpop.f32.mrb[0].mxu0
        %v549 = vadd.f32 %v328, %v548
        %v550 = vpop.f32.mrb[0].mxu0
        %v551 = vpop.f32.mrb[0].mxu0
        %v552 = vadd.f32 %v328, %v551
        %v553 = vpop.f32.mrb[0].mxu0
        %554 = vmatprep.mubr.bf16.mxu0 0
        %555 = vmatmul.mubr.bf16.gmra.mrb[0].mxu0 %v400
        %v556 = vpop.f32.mrb[0].mxu0
        %v557 = vadd.f32 %v328, %v556
        %v558 = vpop.f32.mrb[0].mxu0
        %v559 = vpop.f32.mrb[0].mxu0
        %v560 = vadd.f32 %v328, %v559
        %v561 = vpop.f32.mrb[0].mxu0
        %562 = vmatprep.mubr.bf16.mxu0 0
        %563 = vmatmul.mubr.bf16.gmra.mrb[0].mxu0 %v401
        %v564 = vpop.f32.mrb[0].mxu0
        %v565 = vadd.f32 %v328, %v564
        %v566 = vpop.f32.mrb[0].mxu0
        %v567 = vpop.f32.mrb[0].mxu0
        %v568 = vadd.f32 %v328, %v567
        %v569 = vpop.f32.mrb[0].mxu0
        %570 = vmatprep.mubr.bf16.mxu0 0
        %571 = vmatmul.mubr.bf16.gmra.mrb[0].mxu0 %v402
        %v572 = vpop.f32.mrb[0].mxu0
        %v573 = vadd.f32 %v328, %v572
        %v574 = vpop.f32.mrb[0].mxu0
        %v575 = vpop.f32.mrb[0].mxu0
        %v576 = vadd.f32 %v328, %v575
        %v577 = vpop.f32.mrb[0].mxu0
        %578 = vmatprep.mubr.bf16.mxu0 0
        %579 = vmatmul.mubr.bf16.gmra.mrb[0].mxu0 %v403
        %v580 = vpop.f32.mrb[0].mxu0
        %v581 = vadd.f32 %v328, %v580
        %v582 = vpop.f32.mrb[0].mxu0
        %v583 = vpop.f32.mrb[0].mxu0
        %v584 = vadd.f32 %v328, %v583
        %v585 = vpop.f32.mrb[0].mxu0
        %586 = vmatprep.mubr.bf16.mxu0 0
        %587 = vmatmul.mubr.bf16.gmra.mrb[0].mxu0 %v404
        %v588 = vpop.f32.mrb[0].mxu0
        %v589 = vadd.f32 %v328, %v588
        %v590 = vpop.f32.mrb[0].mxu0
        %v591 = vpop.f32.mrb[0].mxu0
        %v592 = vadd.f32 %v328, %v591
        %v593 = vpop.f32.mrb[0].mxu0
        %594 = vmatprep.mubr.bf16.mxu0 0
        %595 = vmatmul.mubr.bf16.gmra.mrb[0].mxu0 %v405
        %v596 = vpop.f32.mrb[0].mxu0
        %v597 = vadd.f32 %v328, %v596
        %v598 = vpop.f32.mrb[0].mxu0
        %v599 = vpop.f32.mrb[0].mxu0
        %v600 = vadd.f32 %v328, %v599
        %v601 = vpop.f32.mrb[0].mxu0
        %602 = vmatprep.mubr.bf16.mxu0 0
        %603 = vmatmul.mubr.bf16.gmra.mrb[0].mxu0 %v406
        %v604 = vpop.f32.mrb[0].mxu0
        %v605 = vadd.f32 %v328, %v604
        %v606 = vpop.f32.mrb[0].mxu0
        %v607 = vpop.f32.mrb[0].mxu0
        %v608 = vadd.f32 %v328, %v607
        %v609 = vpop.f32.mrb[0].mxu0
        %610 = vmatprep.mubr.bf16.mxu0 0
        %611 = vmatmul.mubr.bf16.gmra.mrb[0].mxu0 %v407
        %v612 = vpop.f32.mrb[0].mxu0
        %v613 = vadd.f32 %v328, %v612
        %v614 = vpop.f32.mrb[0].mxu0
        %v615 = vpop.f32.mrb[0].mxu0
        %v616 = vadd.f32 %v328, %v615
        %v617 = vpop.f32.mrb[0].mxu0
        %618 = vmatprep.mubr.bf16.mxu0 0
        %619 = vmatmul.mubr.bf16.gmra.mrb[0].mxu0 %v408
        %v620 = vpop.f32.mrb[0].mxu0
        %v621 = vadd.f32 %v328, %v620
        %v622 = vpop.f32.mrb[0].mxu0
        %v623 = vpop.f32.mrb[0].mxu0
        %v624 = vadd.f32 %v328, %v623
        %v625 = vpop.f32.mrb[0].mxu0
        %626 = vmatprep.mubr.bf16.mxu0 0
        %627 = vmatmul.mubr.bf16.gmra.mrb[0].mxu0 %v409
        %v628 = vpop.f32.mrb[0].mxu0
        %v629 = vadd.f32 %v328, %v628
        %v630 = vpop.f32.mrb[0].mxu0
        %v631 = vpop.f32.mrb[0].mxu0
        %v632 = vadd.f32 %v328, %v631
        %v633 = vpop.f32.mrb[0].mxu0
        %634 = vdwg.mxu0
        %v635 = vmul.f32 %v509, %v509
        %v636 = vmul.f32 %v512, %v512
        %v637 = vmul.f32 %v517, %v517
        %v638 = vmul.f32 %v520, %v520
        %v639 = vmul.f32 %v525, %v525
        %v640 = vmul.f32 %v528, %v528
        %v641 = vmul.f32 %v533, %v533
        %v642 = vmul.f32 %v536, %v536
        %v643 = vmul.f32 %v541, %v541
        %v644 = vmul.f32 %v544, %v544
        %v645 = vmul.f32 %v549, %v549
        %v646 = vmul.f32 %v552, %v552
        %v647 = vmul.f32 %v557, %v557
        %v648 = vmul.f32 %v560, %v560
        %v649 = vmul.f32 %v565, %v565
        %v650 = vmul.f32 %v568, %v568
        %v651 = vmul.f32 %v573, %v573
        %v652 = vmul.f32 %v576, %v576
        %v653 = vmul.f32 %v581, %v581
        %v654 = vmul.f32 %v584, %v584
        %v655 = vmul.f32 %v589, %v589
        %v656 = vmul.f32 %v592, %v592
        %v657 = vmul.f32 %v597, %v597
        %v658 = vmul.f32 %v600, %v600
        %v659 = vmul.f32 %v605, %v605
        %v660 = vmul.f32 %v608, %v608
        %v661 = vmul.f32 %v613, %v613
        %v662 = vmul.f32 %v616, %v616
        %v663 = vmul.f32 %v621, %v621
        %v664 = vmul.f32 %v624, %v624
        %v665 = vmul.f32 %v629, %v629
        %v666 = vmul.f32 %v632, %v632
        %v667 = vmul.f32 %v509, %v635
        %v668 = vmul.f32 %v512, %v636
        %v669 = vmul.f32 %v517, %v637
        %v670 = vmul.f32 %v520, %v638
        %v671 = vmul.f32 %v525, %v639
        %v672 = vmul.f32 %v528, %v640
        %v673 = vmul.f32 %v533, %v641
        %v674 = vmul.f32 %v536, %v642
        %v675 = vmul.f32 %v541, %v643
        %v676 = vmul.f32 %v544, %v644
        %v677 = vmul.f32 %v549, %v645
        %v678 = vmul.f32 %v552, %v646
        %v679 = vmul.f32 %v557, %v647
        %v680 = vmul.f32 %v560, %v648
        %v681 = vmul.f32 %v565, %v649
        %v682 = vmul.f32 %v568, %v650
        %v683 = vmul.f32 %v573, %v651
        %v684 = vmul.f32 %v576, %v652
        %v685 = vmul.f32 %v581, %v653
        %v686 = vmul.f32 %v584, %v654
        %v687 = vmul.f32 %v589, %v655
        %v688 = vmul.f32 %v592, %v656
        %v689 = vmul.f32 %v597, %v657
        %v690 = vmul.f32 %v600, %v658
        %v691 = vmul.f32 %v605, %v659
        %v692 = vmul.f32 %v608, %v660
        %v693 = vmul.f32 %v613, %v661
        %v694 = vmul.f32 %v616, %v662
        %v695 = vmul.f32 %v621, %v663
        %v696 = vmul.f32 %v624, %v664
        %v697 = vmul.f32 %v629, %v665
        %v698 = vmul.f32 %v632, %v666
        %v699 = vmul.f32 %v667, 0.044715
        %v700 = vmul.f32 %v668, 0.044715
        %v701 = vmul.f32 %v669, 0.044715
        %v702 = vmul.f32 %v670, 0.044715
        %v703 = vmul.f32 %v671, 0.044715
        %v704 = vmul.f32 %v672, 0.044715
        %v705 = vmul.f32 %v673, 0.044715
        %v706 = vmul.f32 %v674, 0.044715
        %v707 = vmul.f32 %v675, 0.044715
        %v708 = vmul.f32 %v676, 0.044715
        %v709 = vmul.f32 %v677, 0.044715
        %v710 = vmul.f32 %v678, 0.044715
        %v711 = vmul.f32 %v679, 0.044715
        %v712 = vmul.f32 %v680, 0.044715
        %v713 = vmul.f32 %v681, 0.044715
        %v714 = vmul.f32 %v682, 0.044715
        %v715 = vmul.f32 %v683, 0.044715
        %v716 = vmul.f32 %v684, 0.044715
        %v717 = vmul.f32 %v685, 0.044715
        %v718 = vmul.f32 %v686, 0.044715
        %v719 = vmul.f32 %v687, 0.044715
        %v720 = vmul.f32 %v688, 0.044715
        %v721 = vmul.f32 %v689, 0.044715
        %v722 = vmul.f32 %v690, 0.044715
        %v723 = vmul.f32 %v691, 0.044715
        %v724 = vmul.f32 %v692, 0.044715
        %v725 = vmul.f32 %v693, 0.044715
        %v726 = vmul.f32 %v694, 0.044715
        %v727 = vmul.f32 %v695, 0.044715
        %v728 = vmul.f32 %v696, 0.044715
        %v729 = vmul.f32 %v697, 0.044715
        %v730 = vmul.f32 %v698, 0.044715
        %v731 = vadd.f32 %v509, %v699
        %v732 = vadd.f32 %v512, %v700
        %v733 = vadd.f32 %v517, %v701
        %v734 = vadd.f32 %v520, %v702
        %v735 = vadd.f32 %v525, %v703
        %v736 = vadd.f32 %v528, %v704
        %v737 = vadd.f32 %v533, %v705
        %v738 = vadd.f32 %v536, %v706
        %v739 = vadd.f32 %v541, %v707
        %v740 = vadd.f32 %v544, %v708
        %v741 = vadd.f32 %v549, %v709
        %v742 = vadd.f32 %v552, %v710
        %v743 = vadd.f32 %v557, %v711
        %v744 = vadd.f32 %v560, %v712
        %v745 = vadd.f32 %v565, %v713
        %v746 = vadd.f32 %v568, %v714
        %v747 = vadd.f32 %v573, %v715
        %v748 = vadd.f32 %v576, %v716
        %v749 = vadd.f32 %v581, %v717
        %v750 = vadd.f32 %v584, %v718
        %v751 = vadd.f32 %v589, %v719
        %v752 = vadd.f32 %v592, %v720
        %v753 = vadd.f32 %v597, %v721
        %v754 = vadd.f32 %v600, %v722
        %v755 = vadd.f32 %v605, %v723
        %v756 = vadd.f32 %v608, %v724
        %v757 = vadd.f32 %v613, %v725
        %v758 = vadd.f32 %v616, %v726
        %v759 = vadd.f32 %v621, %v727
        %v760 = vadd.f32 %v624, %v728
        %v761 = vadd.f32 %v629, %v729
        %v762 = vadd.f32 %v632, %v730
        %v763 = vmul.f32 %v731, 0.7978846
        %v764 = vmul.f32 %v732, 0.7978846
        %v765 = vmul.f32 %v733, 0.7978846
        %v766 = vmul.f32 %v734, 0.7978846
        %v767 = vmul.f32 %v735, 0.7978846
        %v768 = vmul.f32 %v736, 0.7978846
        %v769 = vmul.f32 %v737, 0.7978846
        %v770 = vmul.f32 %v738, 0.7978846
        %v771 = vmul.f32 %v739, 0.7978846
        %v772 = vmul.f32 %v740, 0.7978846
        %v773 = vmul.f32 %v741, 0.7978846
        %v774 = vmul.f32 %v742, 0.7978846
        %v775 = vmul.f32 %v743, 0.7978846
        %v776 = vmul.f32 %v744, 0.7978846
        %v777 = vmul.f32 %v745, 0.7978846
        %v778 = vmul.f32 %v746, 0.7978846
        %v779 = vmul.f32 %v747, 0.7978846
        %v780 = vmul.f32 %v748, 0.7978846
        %v781 = vmul.f32 %v749, 0.7978846
        %v782 = vmul.f32 %v750, 0.7978846
        %v783 = vmul.f32 %v751, 0.7978846
        %v784 = vmul.f32 %v752, 0.7978846
        %v785 = vmul.f32 %v753, 0.7978846
        %v786 = vmul.f32 %v754, 0.7978846
        %v787 = vmul.f32 %v755, 0.7978846
        %v788 = vmul.f32 %v756, 0.7978846
        %v789 = vmul.f32 %v757, 0.7978846
        %v790 = vmul.f32 %v758, 0.7978846
        %v791 = vmul.f32 %v759, 0.7978846
        %v792 = vmul.f32 %v760, 0.7978846
        %v793 = vmul.f32 %v761, 0.7978846
        %v794 = vmul.f32 %v762, 0.7978846
        %v795 = vtanh.pop %v763
        %v796 = vtanh.pop %v764
        %v797 = vtanh.pop %v765
        %v798 = vtanh.pop %v766
        %v799 = vtanh.pop %v767
        %v800 = vtanh.pop %v768
        %v801 = vtanh.pop %v769
        %v802 = vtanh.pop %v770
        %v803 = vtanh.pop %v771
        %v804 = vtanh.pop %v772
        %v805 = vtanh.pop %v773
        %v806 = vtanh.pop %v774
        %v807 = vtanh.pop %v775
        %v808 = vtanh.pop %v776
        %v809 = vtanh.pop %v777
        %v810 = vtanh.pop %v778
        %v811 = vtanh.pop %v779
        %v812 = vtanh.pop %v780
        %v813 = vtanh.pop %v781
        %v814 = vtanh.pop %v782
        %v815 = vtanh.pop %v783
        %v816 = vtanh.pop %v784
        %v817 = vtanh.pop %v785
        %v818 = vtanh.pop %v786
        %v819 = vtanh.pop %v787
        %v820 = vtanh.pop %v788
        %v821 = vtanh.pop %v789
        %v822 = vtanh.pop %v790
        %v823 = vtanh.pop %v791
        %v824 = vtanh.pop %v792
        %v825 = vtanh.pop %v793
        %v826 = vtanh.pop %v794
        %v827 = vadd.f32 %v795, 1.0
        %v828 = vadd.f32 %v796, 1.0
        %v829 = vadd.f32 %v797, 1.0
        %v830 = vadd.f32 %v798, 1.0
        %v831 = vadd.f32 %v799, 1.0
        %v832 = vadd.f32 %v800, 1.0
        %v833 = vadd.f32 %v801, 1.0
        %v834 = vadd.f32 %v802, 1.0
        %v835 = vadd.f32 %v803, 1.0
        %v836 = vadd.f32 %v804, 1.0
        %v837 = vadd.f32 %v805, 1.0
        %v838 = vadd.f32 %v806, 1.0
        %v839 = vadd.f32 %v807, 1.0
        %v840 = vadd.f32 %v808, 1.0
        %v841 = vadd.f32 %v809, 1.0
        %v842 = vadd.f32 %v810, 1.0
        %v843 = vadd.f32 %v811, 1.0
        %v844 = vadd.f32 %v812, 1.0
        %v845 = vadd.f32 %v813, 1.0
        %v846 = vadd.f32 %v814, 1.0
        %v847 = vadd.f32 %v815, 1.0
        %v848 = vadd.f32 %v816, 1.0
        %v849 = vadd.f32 %v817, 1.0
        %v850 = vadd.f32 %v818, 1.0
        %v851 = vadd.f32 %v819, 1.0
        %v852 = vadd.f32 %v820, 1.0
        %v853 = vadd.f32 %v821, 1.0
        %v854 = vadd.f32 %v822, 1.0
        %v855 = vadd.f32 %v823, 1.0
        %v856 = vadd.f32 %v824, 1.0
        %v857 = vadd.f32 %v825, 1.0
        %v858 = vadd.f32 %v826, 1.0
        %v859 = vmul.f32 %v827, 0.5
        %v860 = vmul.f32 %v828, 0.5
        %v861 = vmul.f32 %v829, 0.5
        %v862 = vmul.f32 %v830, 0.5
        %v863 = vmul.f32 %v831, 0.5
        %v864 = vmul.f32 %v832, 0.5
        %v865 = vmul.f32 %v833, 0.5
        %v866 = vmul.f32 %v834, 0.5
        %v867 = vmul.f32 %v835, 0.5
        %v868 = vmul.f32 %v836, 0.5
        %v869 = vmul.f32 %v837, 0.5
        %v870 = vmul.f32 %v838, 0.5
        %v871 = vmul.f32 %v839, 0.5
        %v872 = vmul.f32 %v840, 0.5
        %v873 = vmul.f32 %v841, 0.5
        %v874 = vmul.f32 %v842, 0.5
        %v875 = vmul.f32 %v843, 0.5
        %v876 = vmul.f32 %v844, 0.5
        %v877 = vmul.f32 %v845, 0.5
        %v878 = vmul.f32 %v846, 0.5
        %v879 = vmul.f32 %v847, 0.5
        %v880 = vmul.f32 %v848, 0.5
        %v881 = vmul.f32 %v849, 0.5
        %v882 = vmul.f32 %v850, 0.5
        %v883 = vmul.f32 %v851, 0.5
        %v884 = vmul.f32 %v852, 0.5
        %v885 = vmul.f32 %v853, 0.5
        %v886 = vmul.f32 %v854, 0.5
        %v887 = vmul.f32 %v855, 0.5
        %v888 = vmul.f32 %v856, 0.5
        %v889 = vmul.f32 %v857, 0.5
        %v890 = vmul.f32 %v858, 0.5
        %v891 = vmul.f32 %v509, %v859
        %v892 = vmul.f32 %v512, %v860
        %v893 = vmul.f32 %v517, %v861
        %v894 = vmul.f32 %v520, %v862
        %v895 = vmul.f32 %v525, %v863
        %v896 = vmul.f32 %v528, %v864
        %v897 = vmul.f32 %v533, %v865
        %v898 = vmul.f32 %v536, %v866
        %v899 = vmul.f32 %v541, %v867
        %v900 = vmul.f32 %v544, %v868
        %v901 = vmul.f32 %v549, %v869
        %v902 = vmul.f32 %v552, %v870
        %v903 = vmul.f32 %v557, %v871
        %v904 = vmul.f32 %v560, %v872
        %v905 = vmul.f32 %v565, %v873
        %v906 = vmul.f32 %v568, %v874
        %v907 = vmul.f32 %v573, %v875
        %v908 = vmul.f32 %v576, %v876
        %v909 = vmul.f32 %v581, %v877
        %v910 = vmul.f32 %v584, %v878
        %v911 = vmul.f32 %v589, %v879
        %v912 = vmul.f32 %v592, %v880
        %v913 = vmul.f32 %v597, %v881
        %v914 = vmul.f32 %v600, %v882
        %v915 = vmul.f32 %v605, %v883
        %v916 = vmul.f32 %v608, %v884
        %v917 = vmul.f32 %v613, %v885
        %v918 = vmul.f32 %v616, %v886
        %v919 = vmul.f32 %v621, %v887
        %v920 = vmul.f32 %v624, %v888
        %v921 = vmul.f32 %v629, %v889
        %v922 = vmul.f32 %v632, %v890
        %v923 = vpack.c.bf16 %v892, %v891
        %v924 = vpack.c.bf16 %v894, %v893
        %v925 = vpack.c.bf16 %v896, %v895
        %v926 = vpack.c.bf16 %v898, %v897
        %v927 = vpack.c.bf16 %v900, %v899
        %v928 = vpack.c.bf16 %v902, %v901
        %v929 = vpack.c.bf16 %v904, %v903
        %v930 = vpack.c.bf16 %v906, %v905
        %v931 = vpack.c.bf16 %v908, %v907
        %v932 = vpack.c.bf16 %v910, %v909
        %v933 = vpack.c.bf16 %v912, %v911
        %v934 = vpack.c.bf16 %v914, %v913
        %v935 = vpack.c.bf16 %v916, %v915
        %v936 = vpack.c.bf16 %v918, %v917
        %v937 = vpack.c.bf16 %v920, %v919
        %v938 = vpack.c.bf16 %v922, %v921
        %v939 = vld [vmem:[#allocation7] sm:$0xf]
        %v940 = vld [vmem:[#allocation7 + $0x4] sm:$0xf]
        %v941 = vld [vmem:[#allocation7 + $0x8] sm:$0xf]
        %v942 = vld [vmem:[#allocation7 + $0xc] sm:$0xf]
        %v943 = vld [vmem:[#allocation7 + $0x10] sm:$0xf]
        %v944 = vld [vmem:[#allocation7 + $0x14] sm:$0xf]
        %v945 = vld [vmem:[#allocation7 + $0x18] sm:$0xf]
        %v946 = vld [vmem:[#allocation7 + $0x1c] sm:$0xf]
        %v947 = vld [vmem:[#allocation7 + $0x20] sm:$0xf]
        %v948 = vld [vmem:[#allocation7 + $0x24] sm:$0xf]
        %v949 = vld [vmem:[#allocation7 + $0x28] sm:$0xf]
        %v950 = vld [vmem:[#allocation7 + $0x2c] sm:$0xf]
        %v951 = vld [vmem:[#allocation7 + $0x30] sm:$0xf]
        %v952 = vld [vmem:[#allocation7 + $0x34] sm:$0xf]
        %v953 = vld [vmem:[#allocation7 + $0x38] sm:$0xf]
        %v954 = vld [vmem:[#allocation7 + $0x3c] sm:$0xf]
        %v971 = vunpack.c.l.b16 %v939
        %v972 = vunpack.c.l.b16 %v940
        %v973 = vunpack.c.l.b16 %v941
        %v974 = vunpack.c.l.b16 %v942
        %v975 = vunpack.c.l.b16 %v943
        %v976 = vunpack.c.l.b16 %v944
        %v977 = vunpack.c.l.b16 %v945
        %v978 = vunpack.c.l.b16 %v946
        %v979 = vunpack.c.l.b16 %v947
        %v980 = vunpack.c.l.b16 %v948
        %v981 = vunpack.c.l.b16 %v949
        %v982 = vunpack.c.l.b16 %v950
        %v983 = vunpack.c.l.b16 %v951
        %v984 = vunpack.c.l.b16 %v952
        %v985 = vunpack.c.l.b16 %v953
        %v986 = vunpack.c.l.b16 %v954
        %v987 = vpack.c.b16 %v972, %v971
        %v988 = vpack.c.b16 %v974, %v973
        %v989 = vpack.c.b16 %v976, %v975
        %v990 = vpack.c.b16 %v978, %v977
        %v991 = vpack.c.b16 %v980, %v979
        %v992 = vpack.c.b16 %v982, %v981
        %v993 = vpack.c.b16 %v984, %v983
        %v994 = vpack.c.b16 %v986, %v985
        %1003 = vmatprep.subr.bf16.mxu0 0
        %1004 = vmatpush1.bf16.msra.mxu0 %v987
        %1005 = vmatprep.subr.bf16.mxu0 0
        %1006 = vmatpush1.bf16.msra.mxu0 %v988
        %1007 = vmatprep.subr.bf16.mxu0 0
        %1008 = vmatpush1.bf16.msra.mxu0 %v989
        %1009 = vmatprep.subr.bf16.mxu0 0
        %1010 = vmatpush1.bf16.msra.mxu0 %v990
        %1011 = vmatprep.subr.bf16.mxu0 0
        %1012 = vmatpush1.bf16.msra.mxu0 %v991
        %1013 = vmatprep.subr.bf16.mxu0 0
        %1014 = vmatpush1.bf16.msra.mxu0 %v992
        %1015 = vmatprep.subr.bf16.mxu0 0
        %1016 = vmatpush1.bf16.msra.mxu0 %v993
        %1017 = vmatprep.subr.bf16.mxu0 0
        %1018 = vmatpush1.bf16.msra.mxu0 %v994
        %1019 = vmatprep.subr.bf16.mxu0 0
        %1020 = vmatpush1.bf16.msra.mxu0 0
        %1021 = vmatprep.subr.bf16.mxu0 0
        %1022 = vmatpush1.bf16.msra.mxu0 0
        %1023 = vmatprep.subr.bf16.mxu0 0
        %1024 = vmatpush1.bf16.msra.mxu0 0
        %1025 = vmatprep.subr.bf16.mxu0 0
        %1026 = vmatpush1.bf16.msra.mxu0 0
        %1027 = vmatprep.subr.bf16.mxu0 0
        %1028 = vmatpush1.bf16.msra.mxu0 0
        %1029 = vmatprep.subr.bf16.mxu0 0
        %1030 = vmatpush1.bf16.msra.mxu0 0
        %1031 = vmatprep.subr.bf16.mxu0 0
        %1032 = vmatpush1.bf16.msra.mxu0 0
        %1033 = vmatprep.subr.bf16.mxu0 0
        %1034 = vmatpush1.bf16.msra.mxu0 0
        %1035 = vmatprep.mubr.bf16.mxu0 0
        %1036 = vmatmul.mubr.bf16.gmra.mrb[0].mxu0 %v923
        %v1037 = vpop.f32.mrb[0].mxu0
        %v1038 = vadd.f32 0.0, %v1037
        %v1039 = vpop.f32.mrb[0].mxu0
        %v1040 = vpop.f32.mrb[0].mxu0
        %v1041 = vadd.f32 0.0, %v1040
        %v1042 = vpop.f32.mrb[0].mxu0
        %1043 = vmatprep.mubr.bf16.mxu0 0
        %1044 = vmatmul.mubr.bf16.gmra.mrb[0].mxu0 %v924
        %v1045 = vpop.f32.mrb[0].mxu0
        %v1046 = vadd.f32 0.0, %v1045
        %v1047 = vpop.f32.mrb[0].mxu0
        %v1048 = vpop.f32.mrb[0].mxu0
        %v1049 = vadd.f32 0.0, %v1048
        %v1050 = vpop.f32.mrb[0].mxu0
        %1051 = vmatprep.mubr.bf16.mxu0 0
        %1052 = vmatmul.mubr.bf16.gmra.mrb[0].mxu0 %v925
        %v1053 = vpop.f32.mrb[0].mxu0
        %v1054 = vadd.f32 0.0, %v1053
        %v1055 = vpop.f32.mrb[0].mxu0
        %v1056 = vpop.f32.mrb[0].mxu0
        %v1057 = vadd.f32 0.0, %v1056
        %v1058 = vpop.f32.mrb[0].mxu0
        %1059 = vmatprep.mubr.bf16.mxu0 0
        %1060 = vmatmul.mubr.bf16.gmra.mrb[0].mxu0 %v926
        %v1061 = vpop.f32.mrb[0].mxu0
        %v1062 = vadd.f32 0.0, %v1061
        %v1063 = vpop.f32.mrb[0].mxu0
        %v1064 = vpop.f32.mrb[0].mxu0
        %v1065 = vadd.f32 0.0, %v1064
        %v1066 = vpop.f32.mrb[0].mxu0
        %1067 = vmatprep.mubr.bf16.mxu0 0
        %1068 = vmatmul.mubr.bf16.gmra.mrb[0].mxu0 %v927
        %v1069 = vpop.f32.mrb[0].mxu0
        %v1070 = vadd.f32 0.0, %v1069
        %v1071 = vpop.f32.mrb[0].mxu0
        %v1072 = vpop.f32.mrb[0].mxu0
        %v1073 = vadd.f32 0.0, %v1072
        %v1074 = vpop.f32.mrb[0].mxu0
        %1075 = vmatprep.mubr.bf16.mxu0 0
        %1076 = vmatmul.mubr.bf16.gmra.mrb[0].mxu0 %v928
        %v1077 = vpop.f32.mrb[0].mxu0
        %v1078 = vadd.f32 0.0, %v1077
        %v1079 = vpop.f32.mrb[0].mxu0
        %v1080 = vpop.f32.mrb[0].mxu0
        %v1081 = vadd.f32 0.0, %v1080
        %v1082 = vpop.f32.mrb[0].mxu0
        %1083 = vmatprep.mubr.bf16.mxu0 0
        %1084 = vmatmul.mubr.bf16.gmra.mrb[0].mxu0 %v929
        %v1085 = vpop.f32.mrb[0].mxu0
        %v1086 = vadd.f32 0.0, %v1085
        %v1087 = vpop.f32.mrb[0].mxu0
        %v1088 = vpop.f32.mrb[0].mxu0
        %v1089 = vadd.f32 0.0, %v1088
        %v1090 = vpop.f32.mrb[0].mxu0
        %1091 = vmatprep.mubr.bf16.mxu0 0
        %1092 = vmatmul.mubr.bf16.gmra.mrb[0].mxu0 %v930
        %v1093 = vpop.f32.mrb[0].mxu0
        %v1094 = vadd.f32 0.0, %v1093
        %v1095 = vpop.f32.mrb[0].mxu0
        %v1096 = vpop.f32.mrb[0].mxu0
        %v1097 = vadd.f32 0.0, %v1096
        %v1098 = vpop.f32.mrb[0].mxu0
        %1099 = vmatprep.mubr.bf16.mxu0 0
        %1100 = vmatmul.mubr.bf16.gmra.mrb[0].mxu0 %v931
        %v1101 = vpop.f32.mrb[0].mxu0
        %v1102 = vadd.f32 0.0, %v1101
        %v1103 = vpop.f32.mrb[0].mxu0
        %v1104 = vpop.f32.mrb[0].mxu0
        %v1105 = vadd.f32 0.0, %v1104
        %v1106 = vpop.f32.mrb[0].mxu0
        %1107 = vmatprep.mubr.bf16.mxu0 0
        %1108 = vmatmul.mubr.bf16.gmra.mrb[0].mxu0 %v932
        %v1109 = vpop.f32.mrb[0].mxu0
        %v1110 = vadd.f32 0.0, %v1109
        %v1111 = vpop.f32.mrb[0].mxu0
        %v1112 = vpop.f32.mrb[0].mxu0
        %v1113 = vadd.f32 0.0, %v1112
        %v1114 = vpop.f32.mrb[0].mxu0
        %1115 = vmatprep.mubr.bf16.mxu0 0
        %1116 = vmatmul.mubr.bf16.gmra.mrb[0].mxu0 %v933
        %v1117 = vpop.f32.mrb[0].mxu0
        %v1118 = vadd.f32 0.0, %v1117
        %v1119 = vpop.f32.mrb[0].mxu0
        %v1120 = vpop.f32.mrb[0].mxu0
        %v1121 = vadd.f32 0.0, %v1120
        %v1122 = vpop.f32.mrb[0].mxu0
        %1123 = vmatprep.mubr.bf16.mxu0 0
        %1124 = vmatmul.mubr.bf16.gmra.mrb[0].mxu0 %v934
        %v1125 = vpop.f32.mrb[0].mxu0
        %v1126 = vadd.f32 0.0, %v1125
        %v1127 = vpop.f32.mrb[0].mxu0
        %v1128 = vpop.f32.mrb[0].mxu0
        %v1129 = vadd.f32 0.0, %v1128
        %v1130 = vpop.f32.mrb[0].mxu0
        %1131 = vmatprep.mubr.bf16.mxu0 0
        %1132 = vmatmul.mubr.bf16.gmra.mrb[0].mxu0 %v935
        %v1133 = vpop.f32.mrb[0].mxu0
        %v1134 = vadd.f32 0.0, %v1133
        %v1135 = vpop.f32.mrb[0].mxu0
        %v1136 = vpop.f32.mrb[0].mxu0
        %v1137 = vadd.f32 0.0, %v1136
        %v1138 = vpop.f32.mrb[0].mxu0
        %1139 = vmatprep.mubr.bf16.mxu0 0
        %1140 = vmatmul.mubr.bf16.gmra.mrb[0].mxu0 %v936
        %v1141 = vpop.f32.mrb[0].mxu0
        %v1142 = vadd.f32 0.0, %v1141
        %v1143 = vpop.f32.mrb[0].mxu0
        %v1144 = vpop.f32.mrb[0].mxu0
        %v1145 = vadd.f32 0.0, %v1144
        %v1146 = vpop.f32.mrb[0].mxu0
        %1147 = vmatprep.mubr.bf16.mxu0 0
        %1148 = vmatmul.mubr.bf16.gmra.mrb[0].mxu0 %v937
        %v1149 = vpop.f32.mrb[0].mxu0
        %v1150 = vadd.f32 0.0, %v1149
        %v1151 = vpop.f32.mrb[0].mxu0
        %v1152 = vpop.f32.mrb[0].mxu0
        %v1153 = vadd.f32 0.0, %v1152
        %v1154 = vpop.f32.mrb[0].mxu0
        %1155 = vmatprep.mubr.bf16.mxu0 0
        %1156 = vmatmul.mubr.bf16.gmra.mrb[0].mxu0 %v938
        %v1157 = vpop.f32.mrb[0].mxu0
        %v1158 = vadd.f32 0.0, %v1157
        %v1159 = vpop.f32.mrb[0].mxu0
        %v1160 = vpop.f32.mrb[0].mxu0
        %v1161 = vadd.f32 0.0, %v1160
        %v1162 = vpop.f32.mrb[0].mxu0
        %1163 = vdwg.mxu0
        %v1164 = vunpack.c.l.bf16 %v275
        %v1165 = vunpack.c.l.bf16 %v276
        %v1166 = vunpack.c.l.bf16 %v277
        %v1167 = vunpack.c.l.bf16 %v278
        %v1168 = vunpack.c.l.bf16 %v279
        %v1169 = vunpack.c.l.bf16 %v280
        %v1170 = vunpack.c.l.bf16 %v281
        %v1171 = vunpack.c.l.bf16 %v282
        %v1172 = vunpack.c.l.bf16 %v283
        %v1173 = vunpack.c.l.bf16 %v284
        %v1174 = vunpack.c.l.bf16 %v285
        %v1175 = vunpack.c.l.bf16 %v286
        %v1176 = vunpack.c.l.bf16 %v287
        %v1177 = vunpack.c.l.bf16 %v288
        %v1178 = vunpack.c.l.bf16 %v289
        %v1179 = vunpack.c.l.bf16 %v290
        %v1180 = vunpack.c.l.bf16 %v291
        %v1181 = vunpack.c.l.bf16 %v292
        %v1182 = vunpack.c.l.bf16 %v293
        %v1183 = vunpack.c.l.bf16 %v294
        %v1184 = vunpack.c.l.bf16 %v295
        %v1185 = vunpack.c.l.bf16 %v296
        %v1186 = vunpack.c.l.bf16 %v297
        %v1187 = vunpack.c.l.bf16 %v298
        %v1188 = vunpack.c.l.bf16 %v299
        %v1189 = vunpack.c.l.bf16 %v300
        %v1190 = vunpack.c.l.bf16 %v301
        %v1191 = vunpack.c.l.bf16 %v302
        %v1192 = vunpack.c.l.bf16 %v303
        %v1193 = vunpack.c.l.bf16 %v304
        %v1194 = vunpack.c.l.bf16 %v305
        %v1195 = vunpack.c.l.bf16 %v306
        %v1196 = vadd.f32 %v1164, %v1038
        %v1197 = vadd.f32 %v1165, %v1041
        %v1198 = vadd.f32 %v1166, %v1046
        %v1199 = vadd.f32 %v1167, %v1049
        %v1200 = vadd.f32 %v1168, %v1054
        %v1201 = vadd.f32 %v1169, %v1057
        %v1202 = vadd.f32 %v1170, %v1062
        %v1203 = vadd.f32 %v1171, %v1065
        %v1204 = vadd.f32 %v1172, %v1070
        %v1205 = vadd.f32 %v1173, %v1073
        %v1206 = vadd.f32 %v1174, %v1078
        %v1207 = vadd.f32 %v1175, %v1081
        %v1208 = vadd.f32 %v1176, %v1086
        %v1209 = vadd.f32 %v1177, %v1089
        %v1210 = vadd.f32 %v1178, %v1094
        %v1211 = vadd.f32 %v1179, %v1097
        %v1212 = vadd.f32 %v1180, %v1102
        %v1213 = vadd.f32 %v1181, %v1105
        %v1214 = vadd.f32 %v1182, %v1110
        %v1215 = vadd.f32 %v1183, %v1113
        %v1216 = vadd.f32 %v1184, %v1118
        %v1217 = vadd.f32 %v1185, %v1121
        %v1218 = vadd.f32 %v1186, %v1126
        %v1219 = vadd.f32 %v1187, %v1129
        %v1220 = vadd.f32 %v1188, %v1134
        %v1221 = vadd.f32 %v1189, %v1137
        %v1222 = vadd.f32 %v1190, %v1142
        %v1223 = vadd.f32 %v1191, %v1145
        %v1224 = vadd.f32 %v1192, %v1150
        %v1225 = vadd.f32 %v1193, %v1153
        %v1226 = vadd.f32 %v1194, %v1158
        %v1227 = vadd.f32 %v1195, %v1161
        %v1228 = vld [vmem:[%s4] sm:$0x1]
        %v1230 = vlaneseq
        %v1231 = vshrl.u32 %v1230, 7
        %v1232 = vsub.s32 0, %v1231
        %v1233 = vrot.slane %v1228, %v1232
        %v1235 = vadd.f32 %v1196, %v1233
        %v1236 = vadd.f32 %v1197, %v1233
        %v1237 = vadd.f32 %v1198, %v1233
        %v1238 = vadd.f32 %v1199, %v1233
        %v1239 = vadd.f32 %v1200, %v1233
        %v1240 = vadd.f32 %v1201, %v1233
        %v1241 = vadd.f32 %v1202, %v1233
        %v1242 = vadd.f32 %v1203, %v1233
        %v1243 = vadd.f32 %v1204, %v1233
        %v1244 = vadd.f32 %v1205, %v1233
        %v1245 = vadd.f32 %v1206, %v1233
        %v1246 = vadd.f32 %v1207, %v1233
        %v1247 = vadd.f32 %v1208, %v1233
        %v1248 = vadd.f32 %v1209, %v1233
        %v1249 = vadd.f32 %v1210, %v1233
        %v1250 = vadd.f32 %v1211, %v1233
        %v1251 = vadd.f32 %v1212, %v1233
        %v1252 = vadd.f32 %v1213, %v1233
        %v1253 = vadd.f32 %v1214, %v1233
        %v1254 = vadd.f32 %v1215, %v1233
        %v1255 = vadd.f32 %v1216, %v1233
        %v1256 = vadd.f32 %v1217, %v1233
        %v1257 = vadd.f32 %v1218, %v1233
        %v1258 = vadd.f32 %v1219, %v1233
        %v1259 = vadd.f32 %v1220, %v1233
        %v1260 = vadd.f32 %v1221, %v1233
        %v1261 = vadd.f32 %v1222, %v1233
        %v1262 = vadd.f32 %v1223, %v1233
        %v1263 = vadd.f32 %v1224, %v1233
        %v1264 = vadd.f32 %v1225, %v1233
        %v1265 = vadd.f32 %v1226, %v1233
        %v1266 = vadd.f32 %v1227, %v1233
        %1267 = vst [vmem:[%s271] sm:$0xff] %v1235
        %1268 = vst [vmem:[%s271 + $0x8] sm:$0xff] %v1236
        %1269 = vst [vmem:[%s271 + $0x10] sm:$0xff] %v1237
        %1270 = vst [vmem:[%s271 + $0x18] sm:$0xff] %v1238
        %1271 = vst [vmem:[%s271 + $0x20] sm:$0xff] %v1239
        %1272 = vst [vmem:[%s271 + $0x28] sm:$0xff] %v1240
        %1273 = vst [vmem:[%s271 + $0x30] sm:$0xff] %v1241
        %1274 = vst [vmem:[%s271 + $0x38] sm:$0xff] %v1242
        %1275 = vst [vmem:[%s271 + $0x40] sm:$0xff] %v1243
        %1276 = vst [vmem:[%s271 + $0x48] sm:$0xff] %v1244
        %1277 = vst [vmem:[%s271 + $0x50] sm:$0xff] %v1245
        %1278 = vst [vmem:[%s271 + $0x58] sm:$0xff] %v1246
        %1279 = vst [vmem:[%s271 + $0x60] sm:$0xff] %v1247
        %1280 = vst [vmem:[%s271 + $0x68] sm:$0xff] %v1248
        %1281 = vst [vmem:[%s271 + $0x70] sm:$0xff] %v1249
        %1282 = vst [vmem:[%s271 + $0x78] sm:$0xff] %v1250
        %1283 = vst [vmem:[%s271 + $0x80] sm:$0xff] %v1251
        %1284 = vst [vmem:[%s271 + $0x88] sm:$0xff] %v1252
        %1285 = vst [vmem:[%s271 + $0x90] sm:$0xff] %v1253
        %1286 = vst [vmem:[%s271 + $0x98] sm:$0xff] %v1254
        %1287 = vst [vmem:[%s271 + $0xa0] sm:$0xff] %v1255
        %1288 = vst [vmem:[%s271 + $0xa8] sm:$0xff] %v1256
        %1289 = vst [vmem:[%s271 + $0xb0] sm:$0xff] %v1257
        %1290 = vst [vmem:[%s271 + $0xb8] sm:$0xff] %v1258
        %1291 = vst [vmem:[%s271 + $0xc0] sm:$0xff] %v1259
        %1292 = vst [vmem:[%s271 + $0xc8] sm:$0xff] %v1260
        %1293 = vst [vmem:[%s271 + $0xd0] sm:$0xff] %v1261
        %1294 = vst [vmem:[%s271 + $0xd8] sm:$0xff] %v1262
        %1295 = vst [vmem:[%s271 + $0xe0] sm:$0xff] %v1263
        %1296 = vst [vmem:[%s271 + $0xe8] sm:$0xff] %v1264
        %1297 = vst [vmem:[%s271 + $0xf0] sm:$0xff] %v1265
        %1298 = vst [vmem:[%s271 + $0xf8] sm:$0xff] %v1266
        %s1299 = sand.u32 %s141, 1
        %s1300 = scalar_lea.sflag [#allocation4], %s1299
        %s1301 = sand.u32 %s141, 1
        %s1302 = smul.addr %s1301, 256
        %s1303 = scalar_lea.vmem [#allocation8], %s1302
        // Predicated region
        $region53: #{tpu_custom_call.1} parent=39 // pred_check
          %p1304 = pneg %p151
        $region54: #{tpu_custom_call.1} parent=39 // pred_check_branch
          %1306 = sbr.rel (%p1304) target = $region56
        $region55: #{tpu_custom_call.1} parent=39 // pred_region
          %s1307 = smul.u32 32, %s23
          %s1309 = ssub.s32 4096, 4096
          %1310 = vsyncadd %s1300, %s1309
          %s1311 = smul.addr %s1307, 128
          %s1312 = scalar_lea.hbm %s5, %s1311
          %s1313 = sshll.u32 %s1303, 4
          %s1314 = int_to_ptr.vmem [resolvable:$true] %s1313
          %1319 = dma.vmem_to_hbm [thread:$0]  %s1314, 4096, %s1312, %s1300, 128, 128, 8
        $region56: #{tpu_custom_call.1} parent=39 // pred_fallthru
          _
      $region40: #{tpu_custom_call.1} parent=5 // pred_fallthru
        _
      %p1320 = scmp.le.s32.totalorder 2, %s18
      // Predicated region
      $region57: #{tpu_custom_call.1} parent=5 // pred_check
        %p1321 = pneg %p1320
      $region58: #{tpu_custom_call.1} parent=5 // pred_check_branch
        %1323 = sbr.rel (%p1321) target = $region60
      $region59: #{tpu_custom_call.1} parent=5 // pred_region
        %s1324 = ssub.s32 %s18, 2
        // Predicated region
        $region61: #{tpu_custom_call.1} parent=59 // pred_check
          %p1325 = pneg %p157
        $region62: #{tpu_custom_call.1} parent=59 // pred_check_branch
          %1327 = sbr.rel (%p1325) target = $region64
        $region63: #{tpu_custom_call.1} parent=59 // pred_region
          %s1328 = sand.u32 %s142, 1
          %s1329 = scalar_lea.sflag [#allocation4], %s1328
          %s1330 = sand.u32 %s142, 1
          %s1331 = smul.addr %s1330, 256
          %s1332 = scalar_lea.vmem [#allocation8], %s1331
          %1333 = dma.done %s1329, 4096
        $region64: #{tpu_custom_call.1} parent=59 // pred_fallthru
          _
      $region60: #{tpu_custom_call.1} parent=5 // pred_fallthru
        _
    $region6: #{tpu_custom_call.1} parent=1 // loop_footer
      %s22 = sadd.s32 1, %s18
    $region7: #{tpu_custom_call.1} parent=1 // loop_footer_branch
      %17 = sbr.rel target = $region3
    $region8: #{tpu_custom_call.1} parent=1 // loop_exit
      _
    %1334 = vsyncpa [#allocation3], 1
    %s1335 = scalar_lea.sflag [#allocation3], 1
    %1336 = vsyncpa %s1335, 1
    %1337 = vsyncpa [#allocation6], 1
    %1338 = vsyncpa [#allocation4], 1
    %s1339 = scalar_lea.sflag [#allocation4], 1
    %1340 = vsyncpa %s1339, 1

</llo_original>
